<compile_context>
chip_gen: v7x
topology: tpu7x:2x2x1
jax: 0.10.0
libtpu: 0.0.40
codegen_flags: <defaults>
</compile_context>

<pallas_src>
import jax
import jax.numpy as jnp
from jax import lax
from jax.experimental import pallas as pl
from jax.experimental.pallas import tpu as pltpu

V = 27           # trigram vocab size (26 letters + '.')
V2 = V * V       # 729 — lane-dense flattened last two dims of W
ROW_CHUNK = 256  # rows per in-kernel one-hot/matmul sub-chunk (bounds vreg live range)


def _round_up(n: int, m: int) -> int:
    return ((n + m - 1) // m) * m


def _cdiv(n: int, m: int) -> int:
    return (n + m - 1) // m


def _gather_kernel(x_ref, w_ref, o_ref):
    # x_ref: (TB, 1) int32 indices (VMEM tile of the batch)
    # w_ref: (V, V2) float32 — full W table, resident in VMEM across the grid
    # o_ref: (TB, V2) float32 — lane-dense output tile
    tb = o_ref.shape[0]
    w = w_ref[...]

    def do_rows(r0, rows):
        x_col = x_ref[pl.ds(r0, rows), :]                       # (rows, 1) int32
        iota = lax.broadcasted_iota(jnp.int32, (rows, V), 1)    # (rows, V)
        onehot = (iota == x_col).astype(jnp.float32)            # exact 0/1 rows
        # HIGHEST precision -> multi-pass f32 MXU matmul; with a 0/1 LHS this
        # reproduces the selected W rows bit-exactly (a gather, not an approx).
        # (On v7x, if the vmatmul slot ever co-binds, a bf16 one-hot LHS would
        #  halve the pass count — left as-is since HBM write stays the roofline.)
        o_ref[pl.ds(r0, rows), :] = jnp.dot(
            onehot, w,
            precision=lax.Precision.HIGHEST,
            preferred_element_type=jnp.float32,
        ).astype(o_ref.dtype)

    n_full = tb // ROW_CHUNK
    tail = tb - n_full * ROW_CHUNK
    if n_full > 0:
        # Sub-chunk so the one-hot never occupies more than ~32 vregs; avoids
        # spill traffic on the store slot that is busy writing the output tile.
        def body(c, carry):
            do_rows(pl.multiple_of(c * ROW_CHUNK, ROW_CHUNK), ROW_CHUNK)
            return carry
        lax.fori_loop(0, n_full, body, 0, unroll=True)
    if tail > 0:
        do_rows(n_full * ROW_CHUNK, tail)


def _choose_tiling(B: int, max_tile: int):
    n_tiles = max(1, _cdiv(B, max_tile))
    # v7x megacore: once there is enough work, use >= 2 (and an even number of)
    # grid tiles so dimension_semantics=("parallel",) feeds both TensorCores.
    if B > 256 and n_tiles < 2:
        n_tiles = 2
    if n_tiles > 1 and n_tiles % 2:
        n_tiles += 1
    tb = _round_up(_cdiv(B, n_tiles), 8)   # balanced tiles: < 8 pad rows per tile
    return tb, n_tiles


def trigram_forward(W: jax.Array, x: jax.Array, *,
                    max_tile: int = 2048,
                    xla_fallback_batch: int = 0) -> jax.Array:
    """Pallas equivalent of TrigramClassifier.forward: returns W[x].

    W: (27, 27, 27) float32, x: (B,) integer indices in [0, 27).
    """
    B = int(x.shape[0])
    # Tiny batches: the fixed pallas_call launch cost exceeds the useful work;
    # production code would set xla_fallback_batch ~1-2K. Kept at 0 in the demo
    # so the kernel path is always exercised.
    if B < xla_fallback_batch:
        return W[x]

    TB, n_tiles = _choose_tiling(B, max_tile)
    B_pad = TB * n_tiles

    # Gather-like semantics for out-of-range indices (clamp instead of silently
    # emitting an all-zero row from an all-zero one-hot).
    xi = jnp.clip(x.astype(jnp.int32), 0, V - 1)
    if B_pad != B:
        xi = jnp.pad(xi, (0, B_pad - B))     # pad with valid index 0 (< 8 rows/tile)
    x2d = xi.reshape(B_pad, 1)
    W2d = W.reshape(V, V2)                   # lane-dense table, ~96 KiB in VMEM

    cost = pl.CostEstimate(
        flops=2 * B_pad * V * V2,                     # one-hot MXU matmul (advisory)
        transcendentals=0,
        bytes_accessed=B_pad * 4 + V * V2 * 4 + B_pad * V2 * 4,
    )

    out2d = pl.pallas_call(
        _gather_kernel,
        grid_spec=pltpu.PrefetchScalarGridSpec(
            num_scalar_prefetch=0,
            grid=(n_tiles,),
            in_specs=[
                # Batch tile of indices.
                pl.BlockSpec((TB, 1), lambda i: (i, 0)),
                # Full W table, constant block index -> stays resident in VMEM.
                pl.BlockSpec((V, V2), lambda i: (0, 0)),
            ],
            # Lane-dense output tile (729 wide -> ~95% lane utilization).
            out_specs=pl.BlockSpec((TB, V2), lambda i: (i, 0)),
        ),
        out_shape=jax.ShapeDtypeStruct((B_pad, V2), W.dtype),
        compiler_params=pltpu.CompilerParams(
            dimension_semantics=("parallel",),   # independent batch tiles (2 TCs on v7x)
        ),
        cost_estimate=cost,
    )(x2d, W2d)

    if B_pad != B:
        out2d = out2d[:B]                  # only copies when padding was needed
    return out2d.reshape(B, V, V)          # free bitcast when B_pad == B


if __name__ == "__main__":
    # Deterministic small example inputs.
    key = jax.random.PRNGKey(0)
    w_key, x_key = jax.random.split(key)

    # Synthetic stand-in for torch.randn((27,27,27), generator=g).
    W = jax.random.normal(w_key, (V, V, V), dtype=jnp.float32)

    # Small batch of trigram context indices.
    B = 64
    x = jax.random.randint(x_key, (B,), 0, V, dtype=jnp.int32)

    out = jax.block_until_ready(trigram_forward(W, x))

    # Bit-exact check against plain-JAX reference of W[x] (HIGHEST-precision
    # one-hot matmul reproduces the gathered rows exactly).
    ref = W[x]
    assert out.shape == (B, V, V), out.shape
    assert jnp.array_equal(out, ref), "mismatch vs reference gather W[x]"

    print("KERNEL_OK")
</pallas_src>

<mosaic_0001>
module attributes {stable_mosaic.version = 11 : i64} {
  func.func @_gather_kernel(%arg0: i32, %arg1: memref<64x1xi32, #tpu.memory_space<vmem>>, %arg2: memref<27x729xf32, #tpu.memory_space<vmem>>, %arg3: memref<64x729xf32, #tpu.memory_space<vmem>>) attributes {dimension_semantics = [#tpu.dimension_semantics<parallel>], iteration_bounds = array<i64: 1>, scalar_prefetch = 0 : i64, scratch_operands = 0 : i64, tpu.core_type = #tpu.core_type<tc>, window_params = [{transform_indices = @transform_0, window_bounds = array<i64: 64, 1>}, {pipeline_mode = #tpu.pipeline_mode<synchronous>, transform_indices = @transform_1, window_bounds = array<i64: 27, 729>}, {transform_indices = @transform_2, window_bounds = array<i64: 64, 729>}]} {
    %c0 = arith.constant 0 : index
    %c0_0 = arith.constant 0 : index
    %0 = vector.load %arg2[%c0, %c0_0] : memref<27x729xf32, #tpu.memory_space<vmem>>, vector<27x729xf32>
    %c0_1 = arith.constant 0 : index
    %c0_2 = arith.constant 0 : index
    %1 = vector.load %arg1[%c0_1, %c0_2] : memref<64x1xi32, #tpu.memory_space<vmem>>, vector<64x1xi32>
    %2 = tpu.iota {dimensions = array<i32: 1>} : vector<64x27xi32>
    %3 = vector.broadcast %1 : vector<64x1xi32> to vector<64x27xi32>
    %4 = arith.cmpi eq, %2, %3 : vector<64x27xi32>
    %5 = arith.extui %4 : vector<64x27xi1> to vector<64x27xi32>
    %6 = arith.sitofp %5 : vector<64x27xi32> to vector<64x27xf32>
    %cst = arith.constant dense<0.000000e+00> : vector<64x729xf32>
    %7 = tpu.matmul %6, %0, %cst {dimension_numbers = #tpu.dot_dimension_numbers<[1], [0], [0], [1], [0, 0, 1, 1], [], []>, precision = #tpu.contract_precision<fp32>} : vector<64x27xf32>, vector<27x729xf32>, vector<64x729xf32> -> vector<64x729xf32>
    %c0_3 = arith.constant 0 : index
    %c0_4 = arith.constant 0 : index
    %8 = vector.load %arg3[%c0_3, %c0_4] : memref<64x729xf32, #tpu.memory_space<vmem>>, vector<64x729xf32>
    tpu.vector_store %arg3[%c0_3, %c0_4], %7 {strides = array<i32>} : memref<64x729xf32, #tpu.memory_space<vmem>>, vector<64x729xf32>,
    return
  }
  func.func @transform_0(%arg0: i32) -> (i32, i32) {
    %c0_i32 = arith.constant 0 : i32
    %c0_i32_0 = arith.constant 0 : i32
    return %arg0, %c0_i32 : i32, i32
  }
  func.func @transform_1(%arg0: i32) -> (i32, i32) {
    %c0_i32 = arith.constant 0 : i32
    %c0_i32_0 = arith.constant 0 : i32
    %c0_i32_1 = arith.constant 0 : i32
    return %c0_i32, %c0_i32_0 : i32, i32
  }
  func.func @transform_2(%arg0: i32) -> (i32, i32) {
    %c0_i32 = arith.constant 0 : i32
    %c0_i32_0 = arith.constant 0 : i32
    return %arg0, %c0_i32 : i32, i32
  }
}

</mosaic_0001>

<llo_original>
// kernel: tpu_custom_call.1
$region0: #{tpu_custom_call.1}
  #allocation0 [shape = 'u32[]', space=smem, size = 0x4, offset = 0x4, fixed_abs, tag = 'smem constant byte address 0x4 - core index']
  #allocation1 [shape = 'u32[144,128]{1,0:T(1,128)}', space=vmem, size = 0x12000, scoped, tag = 'internal scratch']
  %s0 = inlined_call_operand.vmem [shape: s32[64,1], index: 0, kind: input, shape index: {}]
  %s1 = inlined_call_operand.hbm [shape: f32[27,729], index: 1, kind: input, shape index: {}]
  %s2 = inlined_call_operand.hbm [shape: f32[64,729], index: 2, kind: output, shape index: {}]
  %s3 = sld [smem:[#allocation0]]
  $region22: #{tpu_custom_call.1} parent=0
    _
  %s5 = ssub.s32 1, %s3
  %s6 = scalar_select 0, %s5, %s3
  $region1: #{tpu_custom_call.1} parent=0
    #allocation2 [shape = 'u8[98304]{0}', space=vmem, size = 0x18000, scoped, tag = 'input window, operand 1, single buffered']
    #allocation3 [shape = 's32[1]{0}', space=sflag, size = 0x4, scoped, tag = 'scoped memory for tpu_custom_call.1']
    #allocation4 [shape = 's32[1]{0}', space=sflag, size = 0x4, scoped, tag = 'scoped memory for tpu_custom_call.1']
    #allocation5 [shape = 'u8[196608]{0}', space=vmem, size = 0x30000, scoped, tag = 'output window, operand 0, single buffered']
    %7 = vsyncpa [#allocation3], 0
    %8 = vsyncpa [#allocation4], 0
    // Predicated region
    $region2: #{tpu_custom_call.1} parent=1 // pred_check
      _
    $region3: #{tpu_custom_call.1} parent=1 // pred_check_branch
      %10 = sbr.rel (0) target = $region5
    $region4: #{tpu_custom_call.1} parent=1 // pred_region
      _
    $region5: #{tpu_custom_call.1} parent=1 // pred_fallthru
      _
    // Predicated region
    $region6: #{tpu_custom_call.1} parent=1 // pred_check
      _
    $region7: #{tpu_custom_call.1} parent=1 // pred_check_branch
      %12 = sbr.rel (0) target = $region9
    $region8: #{tpu_custom_call.1} parent=1 // pred_region
      %s14 = ssub.s32 3072, 3072
      %15 = vsyncadd [#allocation3], %s14
      %s16 = sshll.u32 [#allocation2], 4
      %s17 = int_to_ptr.vmem [resolvable:$true] %s16
      %22 = dma.hbm_to_vmem [thread:$0]  %s1, 3072, %s17, [#allocation3], 768, 768, 48
    $region9: #{tpu_custom_call.1} parent=1 // pred_fallthru
      _
    // Predicated region
    $region10: #{tpu_custom_call.1} parent=1 // pred_check
      _
    $region11: #{tpu_custom_call.1} parent=1 // pred_check_branch
      %24 = sbr.rel (0) target = $region13
    $region12: #{tpu_custom_call.1} parent=1 // pred_region
      %25 = dma.done [#allocation3], 3072
    $region13: #{tpu_custom_call.1} parent=1 // pred_fallthru
      _
    %v26 = vld [vmem:[#allocation2] sm:$0xff]
    %v27 = vld [vmem:[#allocation2 + $0x8] sm:$0xff]
    %v28 = vld [vmem:[#allocation2 + $0x10] sm:$0xff]
    %v29 = vld [vmem:[#allocation2 + $0x18] sm:$0xff]
    %v30 = vld [vmem:[#allocation2 + $0x20] sm:$0xff]
    %v31 = vld [vmem:[#allocation2 + $0x28] sm:$0xff]
    %v32 = vld [vmem:[#allocation2 + $0x30] sm:$0xff]
    %v33 = vld [vmem:[#allocation2 + $0x38] sm:$0xff]
    %v34 = vld [vmem:[#allocation2 + $0x40] sm:$0xff]
    %v35 = vld [vmem:[#allocation2 + $0x48] sm:$0xff]
    %v36 = vld [vmem:[#allocation2 + $0x50] sm:$0xff]
    %v37 = vld [vmem:[#allocation2 + $0x58] sm:$0xff]
    %v38 = vld [vmem:[#allocation2 + $0x60] sm:$0xff]
    %v39 = vld [vmem:[#allocation2 + $0x68] sm:$0xff]
    %v40 = vld [vmem:[#allocation2 + $0x70] sm:$0xff]
    %v41 = vld [vmem:[#allocation2 + $0x78] sm:$0xff]
    %v42 = vld [vmem:[#allocation2 + $0x80] sm:$0xff]
    %v43 = vld [vmem:[#allocation2 + $0x88] sm:$0xff]
    %v44 = vld [vmem:[#allocation2 + $0x90] sm:$0x7]
    %v45 = vld [vmem:[#allocation2 + $0x98] sm:$0x7]
    %v46 = vld [vmem:[#allocation2 + $0xa0] sm:$0x7]
    %v47 = vld [vmem:[#allocation2 + $0xa8] sm:$0x7]
    %v48 = vld [vmem:[#allocation2 + $0xb0] sm:$0x7]
    %v49 = vld [vmem:[#allocation2 + $0xb8] sm:$0x7]
    %v50 = vld [vmem:[%s0] sm:$0xff]
    %v51 = vld [vmem:[%s0 + $0x8] sm:$0xff]
    %v52 = vld [vmem:[%s0 + $0x10] sm:$0xff]
    %v53 = vld [vmem:[%s0 + $0x18] sm:$0xff]
    %v54 = vld [vmem:[%s0 + $0x20] sm:$0xff]
    %v55 = vld [vmem:[%s0 + $0x28] sm:$0xff]
    %v56 = vld [vmem:[%s0 + $0x30] sm:$0xff]
    %v57 = vld [vmem:[%s0 + $0x38] sm:$0xff]
    %v58 = vlaneseq
    %v59 = vand.u32 %v58, 127
    %60 = vset.pattern.permute.xlu0 0
    %61 = vperm.xlu0 %60, %v50
    %v62 = vpop.permute.xlu0 %61
    %63 = vset.pattern.permute.xlu0 0
    %64 = vperm.xlu0 %63, %v51
    %v65 = vpop.permute.xlu0 %64
    %66 = vset.pattern.permute.xlu0 0
    %67 = vperm.xlu0 %66, %v52
    %v68 = vpop.permute.xlu0 %67
    %69 = vset.pattern.permute.xlu0 0
    %70 = vperm.xlu0 %69, %v53
    %v71 = vpop.permute.xlu0 %70
    %72 = vset.pattern.permute.xlu0 0
    %73 = vperm.xlu0 %72, %v54
    %v74 = vpop.permute.xlu0 %73
    %75 = vset.pattern.permute.xlu0 0
    %76 = vperm.xlu0 %75, %v55
    %v77 = vpop.permute.xlu0 %76
    %78 = vset.pattern.permute.xlu0 0
    %79 = vperm.xlu0 %78, %v56
    %v80 = vpop.permute.xlu0 %79
    %81 = vset.pattern.permute.xlu0 0
    %82 = vperm.xlu0 %81, %v57
    %v83 = vpop.permute.xlu0 %82
    %vm84 = vcmp.eq.s32.totalorder %v59, %v62
    %vm85 = vcmp.eq.s32.totalorder %v59, %v65
    %vm86 = vcmp.eq.s32.totalorder %v59, %v68
    %vm87 = vcmp.eq.s32.totalorder %v59, %v71
    %vm88 = vcmp.eq.s32.totalorder %v59, %v74
    %vm89 = vcmp.eq.s32.totalorder %v59, %v77
    %vm90 = vcmp.eq.s32.totalorder %v59, %v80
    %vm91 = vcmp.eq.s32.totalorder %v59, %v83
    %v92 = vsel %vm84, 1, 0
    %v93 = vsel %vm85, 1, 0
    %v94 = vsel %vm86, 1, 0
    %v95 = vsel %vm87, 1, 0
    %v96 = vsel %vm88, 1, 0
    %v97 = vsel %vm89, 1, 0
    %v98 = vsel %vm90, 1, 0
    %v99 = vsel %vm91, 1, 0
    %v100 = vcvt.s32.f32 %v92
    %v101 = vcvt.s32.f32 %v93
    %v102 = vcvt.s32.f32 %v94
    %v103 = vcvt.s32.f32 %v95
    %v104 = vcvt.s32.f32 %v96
    %v105 = vcvt.s32.f32 %v97
    %v106 = vcvt.s32.f32 %v98
    %v107 = vcvt.s32.f32 %v99
    %vm108 = vcmask 220160
    %v110 = vsel %vm108, %v100, 0
    %v113 = vsel %vm108, %v101, 0
    %v116 = vsel %vm108, %v102, 0
    %v119 = vsel %vm108, %v103, 0
    %v122 = vsel %vm108, %v104, 0
    %v125 = vsel %vm108, %v105, 0
    %v128 = vsel %vm108, %v106, 0
    %v131 = vsel %vm108, %v107, 0
    %vm133 = vcmask 1042432
    %v135 = vsel %vm133, %v44, 0
    %v138 = vsel %vm133, %v45, 0
    %v141 = vsel %vm133, %v46, 0
    %v144 = vsel %vm133, %v47, 0
    %v147 = vsel %vm133, %v48, 0
    %v150 = vsel %vm133, %v49, 0
    %v152 = vand.u32 %v27, 4294901760
    %153 = vmatprep.subr.mxu0 %v152
    %v154 = vand.u32 %v26, 4294901760
    %155 = vmatpush1.msra.mxu0 %v154
    %v156 = vand.u32 %v33, 4294901760
    %157 = vmatprep.subr.mxu0 %v156
    %v158 = vand.u32 %v32, 4294901760
    %159 = vmatpush1.msra.mxu0 %v158
    %v160 = vand.u32 %v39, 4294901760
    %161 = vmatprep.subr.mxu0 %v160
    %v162 = vand.u32 %v38, 4294901760
    %163 = vmatpush1.msra.mxu0 %v162
    %v164 = vand.u32 %v138, 4294901760
    %165 = vmatprep.subr.mxu0 %v164
    %v166 = vand.u32 %v135, 4294901760
    %167 = vmatpush1.msra.mxu0 %v166
    %168 = vmatprep.subr.mxu0 0.0
    %169 = vmatpush1.msra.mxu0 0.0
    %170 = vmatprep.subr.mxu0 0.0
    %171 = vmatpush1.msra.mxu0 0.0
    %172 = vmatprep.subr.mxu0 0.0
    %173 = vmatpush1.msra.mxu0 0.0
    %174 = vmatprep.subr.mxu0 0.0
    %175 = vmatpush1.msra.mxu0 0.0
    %176 = vmatprep.subr.mxu0 0.0
    %177 = vmatpush1.msra.mxu0 0.0
    %178 = vmatprep.subr.mxu0 0.0
    %179 = vmatpush1.msra.mxu0 0.0
    %180 = vmatprep.subr.mxu0 0.0
    %181 = vmatpush1.msra.mxu0 0.0
    %182 = vmatprep.subr.mxu0 0.0
    %183 = vmatpush1.msra.mxu0 0.0
    %184 = vmatprep.subr.mxu0 0.0
    %185 = vmatpush1.msra.mxu0 0.0
    %186 = vmatprep.subr.mxu0 0.0
    %187 = vmatpush1.msra.mxu0 0.0
    %188 = vmatprep.subr.mxu0 0.0
    %189 = vmatpush1.msra.mxu0 0.0
    %190 = vmatprep.subr.mxu0 0.0
    %191 = vmatpush1.msra.mxu0 0.0
    %192 = vmatprep.subr.mxu0 0.0
    %193 = vmatpush1.msra.mxu0 0.0
    %194 = vmatprep.subr.mxu0 0.0
    %195 = vmatpush1.msra.mxu0 0.0
    %196 = vmatprep.subr.mxu0 0.0
    %197 = vmatpush1.msra.mxu0 0.0
    %198 = vmatprep.subr.mxu0 0.0
    %199 = vmatpush1.msra.mxu0 0.0
    %200 = vmatprep.subr.mxu0 0.0
    %201 = vmatpush1.msra.mxu0 0.0
    %202 = vmatprep.subr.mxu0 0.0
    %203 = vmatpush1.msra.mxu0 0.0
    %204 = vmatprep.subr.mxu0 0.0
    %205 = vmatpush1.msra.mxu0 0.0
    %206 = vmatprep.subr.mxu0 0.0
    %207 = vmatpush1.msra.mxu0 0.0
    %208 = vmatprep.subr.mxu0 0.0
    %209 = vmatpush1.msra.mxu0 0.0
    %210 = vmatprep.subr.mxu0 0.0
    %211 = vmatpush1.msra.mxu0 0.0
    %212 = vmatprep.subr.mxu0 0.0
    %213 = vmatpush1.msra.mxu0 0.0
    %214 = vmatprep.subr.mxu0 0.0
    %215 = vmatpush1.msra.mxu0 0.0
    %216 = vmatprep.subr.mxu0 0.0
    %217 = vmatpush1.msra.mxu0 0.0
    %218 = vmatprep.subr.mxu0 0.0
    %219 = vmatpush1.msra.mxu0 0.0
    %220 = vmatprep.subr.mxu0 0.0
    %221 = vmatpush1.msra.mxu0 0.0
    %222 = vmatprep.subr.mxu0 0.0
    %223 = vmatpush1.msra.mxu0 0.0
    %224 = vmatprep.mubr.f32.mxu0 0.0
    %v225 = vand.u32 %v110, 4294901760
    %v226 = vsub.f32 %v110, %v225
    %v227 = vand.u32 %v226, 4294901760
    %v228 = vsub.f32 %v226, %v227
    %v229 = vand.u32 %v228, 4294901760
    %230 = vmatmul.mubr.f32.gmra.mrb[0].mxu0 %v229
    %v231 = vpop.f32.mrb[0].mxu0
    %v232 = vadd.f32 0.0, %v231
    %v233 = vpop.f32.mrb[0].mxu0
    %v234 = vadd.f32 0.0, %v233
    %235 = vmatprep.mubr.f32.mxu0 0.0
    %v236 = vand.u32 %v113, 4294901760
    %v237 = vsub.f32 %v113, %v236
    %v238 = vand.u32 %v237, 4294901760
    %v239 = vsub.f32 %v237, %v238
    %v240 = vand.u32 %v239, 4294901760
    %241 = vmatmul.mubr.f32.gmra.mrb[0].mxu0 %v240
    %v242 = vpop.f32.mrb[0].mxu0
    %v243 = vadd.f32 0.0, %v242
    %v244 = vpop.f32.mrb[0].mxu0
    %v245 = vadd.f32 0.0, %v244
    %246 = vmatprep.mubr.f32.mxu0 0.0
    %v247 = vand.u32 %v116, 4294901760
    %v248 = vsub.f32 %v116, %v247
    %v249 = vand.u32 %v248, 4294901760
    %v250 = vsub.f32 %v248, %v249
    %v251 = vand.u32 %v250, 4294901760
    %252 = vmatmul.mubr.f32.gmra.mrb[0].mxu0 %v251
    %v253 = vpop.f32.mrb[0].mxu0
    %v254 = vadd.f32 0.0, %v253
    %v255 = vpop.f32.mrb[0].mxu0
    %v256 = vadd.f32 0.0, %v255
    %257 = vmatprep.mubr.f32.mxu0 0.0
    %v258 = vand.u32 %v119, 4294901760
    %v259 = vsub.f32 %v119, %v258
    %v260 = vand.u32 %v259, 4294901760
    %v261 = vsub.f32 %v259, %v260
    %v262 = vand.u32 %v261, 4294901760
    %263 = vmatmul.mubr.f32.gmra.mrb[0].mxu0 %v262
    %v264 = vpop.f32.mrb[0].mxu0
    %v265 = vadd.f32 0.0, %v264
    %v266 = vpop.f32.mrb[0].mxu0
    %v267 = vadd.f32 0.0, %v266
    %268 = vmatprep.mubr.f32.mxu0 0.0
    %v269 = vand.u32 %v122, 4294901760
    %v270 = vsub.f32 %v122, %v269
    %v271 = vand.u32 %v270, 4294901760
    %v272 = vsub.f32 %v270, %v271
    %v273 = vand.u32 %v272, 4294901760
    %274 = vmatmul.mubr.f32.gmra.mrb[0].mxu0 %v273
    %v275 = vpop.f32.mrb[0].mxu0
    %v276 = vadd.f32 0.0, %v275
    %v277 = vpop.f32.mrb[0].mxu0
    %v278 = vadd.f32 0.0, %v277
    %279 = vmatprep.mubr.f32.mxu0 0.0
    %v280 = vand.u32 %v125, 4294901760
    %v281 = vsub.f32 %v125, %v280
    %v282 = vand.u32 %v281, 4294901760
    %v283 = vsub.f32 %v281, %v282
    %v284 = vand.u32 %v283, 4294901760
    %285 = vmatmul.mubr.f32.gmra.mrb[0].mxu0 %v284
    %v286 = vpop.f32.mrb[0].mxu0
    %v287 = vadd.f32 0.0, %v286
    %v288 = vpop.f32.mrb[0].mxu0
    %v289 = vadd.f32 0.0, %v288
    %290 = vmatprep.mubr.f32.mxu0 0.0
    %v291 = vand.u32 %v128, 4294901760
    %v292 = vsub.f32 %v128, %v291
    %v293 = vand.u32 %v292, 4294901760
    %v294 = vsub.f32 %v292, %v293
    %v295 = vand.u32 %v294, 4294901760
    %296 = vmatmul.mubr.f32.gmra.mrb[0].mxu0 %v295
    %v297 = vpop.f32.mrb[0].mxu0
    %v298 = vadd.f32 0.0, %v297
    %v299 = vpop.f32.mrb[0].mxu0
    %v300 = vadd.f32 0.0, %v299
    %301 = vmatprep.mubr.f32.mxu0 0.0
    %v302 = vand.u32 %v131, 4294901760
    %v303 = vsub.f32 %v131, %v302
    %v304 = vand.u32 %v303, 4294901760
    %v305 = vsub.f32 %v303, %v304
    %v306 = vand.u32 %v305, 4294901760
    %307 = vmatmul.mubr.f32.gmra.mrb[0].mxu0 %v306
    %v308 = vpop.f32.mrb[0].mxu0
    %v309 = vadd.f32 0.0, %v308
    %v310 = vpop.f32.mrb[0].mxu0
    %v311 = vadd.f32 0.0, %v310
    %312 = vdwg.mxu0
    %v313 = vand.u32 %v27, 4294901760
    %v314 = vsub.f32 %v27, %v313
    %v315 = vand.u32 %v314, 4294901760
    %v316 = vsub.f32 %v314, %v315
    %v317 = vand.u32 %v316, 4294901760
    %318 = vmatprep.subr.mxu0 %v317
    %v319 = vand.u32 %v26, 4294901760
    %v320 = vsub.f32 %v26, %v319
    %v321 = vand.u32 %v320, 4294901760
    %v322 = vsub.f32 %v320, %v321
    %v323 = vand.u32 %v322, 4294901760
    %324 = vmatpush1.msra.mxu0 %v323
    %v325 = vand.u32 %v33, 4294901760
    %v326 = vsub.f32 %v33, %v325
    %v327 = vand.u32 %v326, 4294901760
    %v328 = vsub.f32 %v326, %v327
    %v329 = vand.u32 %v328, 4294901760
    %330 = vmatprep.subr.mxu0 %v329
    %v331 = vand.u32 %v32, 4294901760
    %v332 = vsub.f32 %v32, %v331
    %v333 = vand.u32 %v332, 4294901760
    %v334 = vsub.f32 %v332, %v333
    %v335 = vand.u32 %v334, 4294901760
    %336 = vmatpush1.msra.mxu0 %v335
    %v337 = vand.u32 %v39, 4294901760
    %v338 = vsub.f32 %v39, %v337
    %v339 = vand.u32 %v338, 4294901760
    %v340 = vsub.f32 %v338, %v339
    %v341 = vand.u32 %v340, 4294901760
    %342 = vmatprep.subr.mxu0 %v341
    %v343 = vand.u32 %v38, 4294901760
    %v344 = vsub.f32 %v38, %v343
    %v345 = vand.u32 %v344, 4294901760
    %v346 = vsub.f32 %v344, %v345
    %v347 = vand.u32 %v346, 4294901760
    %348 = vmatpush1.msra.mxu0 %v347
    %v349 = vand.u32 %v138, 4294901760
    %v350 = vsub.f32 %v138, %v349
    %v351 = vand.u32 %v350, 4294901760
    %v352 = vsub.f32 %v350, %v351
    %v353 = vand.u32 %v352, 4294901760
    %354 = vmatprep.subr.mxu0 %v353
    %v355 = vand.u32 %v135, 4294901760
    %v356 = vsub.f32 %v135, %v355
    %v357 = vand.u32 %v356, 4294901760
    %v358 = vsub.f32 %v356, %v357
    %v359 = vand.u32 %v358, 4294901760
    %360 = vmatpush1.msra.mxu0 %v359
    %361 = vmatprep.subr.mxu0 0.0
    %362 = vmatpush1.msra.mxu0 0.0
    %363 = vmatprep.subr.mxu0 0.0
    %364 = vmatpush1.msra.mxu0 0.0
    %365 = vmatprep.subr.mxu0 0.0
    %366 = vmatpush1.msra.mxu0 0.0
    %367 = vmatprep.subr.mxu0 0.0
    %368 = vmatpush1.msra.mxu0 0.0
    %369 = vmatprep.subr.mxu0 0.0
    %370 = vmatpush1.msra.mxu0 0.0
    %371 = vmatprep.subr.mxu0 0.0
    %372 = vmatpush1.msra.mxu0 0.0
    %373 = vmatprep.subr.mxu0 0.0
    %374 = vmatpush1.msra.mxu0 0.0
    %375 = vmatprep.subr.mxu0 0.0
    %376 = vmatpush1.msra.mxu0 0.0
    %377 = vmatprep.subr.mxu0 0.0
    %378 = vmatpush1.msra.mxu0 0.0
    %379 = vmatprep.subr.mxu0 0.0
    %380 = vmatpush1.msra.mxu0 0.0
    %381 = vmatprep.subr.mxu0 0.0
    %382 = vmatpush1.msra.mxu0 0.0
    %383 = vmatprep.subr.mxu0 0.0
    %384 = vmatpush1.msra.mxu0 0.0
    %385 = vmatprep.subr.mxu0 0.0
    %386 = vmatpush1.msra.mxu0 0.0
    %387 = vmatprep.subr.mxu0 0.0
    %388 = vmatpush1.msra.mxu0 0.0
    %389 = vmatprep.subr.mxu0 0.0
    %390 = vmatpush1.msra.mxu0 0.0
    %391 = vmatprep.subr.mxu0 0.0
    %392 = vmatpush1.msra.mxu0 0.0
    %393 = vmatprep.subr.mxu0 0.0
    %394 = vmatpush1.msra.mxu0 0.0
    %395 = vmatprep.subr.mxu0 0.0
    %396 = vmatpush1.msra.mxu0 0.0
    %397 = vmatprep.subr.mxu0 0.0
    %398 = vmatpush1.msra.mxu0 0.0
    %399 = vmatprep.subr.mxu0 0.0
    %400 = vmatpush1.msra.mxu0 0.0
    %401 = vmatprep.subr.mxu0 0.0
    %402 = vmatpush1.msra.mxu0 0.0
    %403 = vmatprep.subr.mxu0 0.0
    %404 = vmatpush1.msra.mxu0 0.0
    %405 = vmatprep.subr.mxu0 0.0
    %406 = vmatpush1.msra.mxu0 0.0
    %407 = vmatprep.subr.mxu0 0.0
    %408 = vmatpush1.msra.mxu0 0.0
    %409 = vmatprep.subr.mxu0 0.0
    %410 = vmatpush1.msra.mxu0 0.0
    %411 = vmatprep.subr.mxu0 0.0
    %412 = vmatpush1.msra.mxu0 0.0
    %413 = vmatprep.subr.mxu0 0.0
    %414 = vmatpush1.msra.mxu0 0.0
    %415 = vmatprep.subr.mxu0 0.0
    %416 = vmatpush1.msra.mxu0 0.0
    %417 = vmatprep.mubr.f32.mxu0 0.0
    %v418 = vand.u32 %v110, 4294901760
    %419 = vmatmul.mubr.f32.gmra.mrb[0].mxu0 %v418
    %v420 = vpop.f32.mrb[0].mxu0
    %v421 = vadd.f32 %v232, %v420
    %v422 = vpop.f32.mrb[0].mxu0
    %v423 = vadd.f32 %v234, %v422
    %424 = vmatprep.mubr.f32.mxu0 0.0
    %v425 = vand.u32 %v113, 4294901760
    %426 = vmatmul.mubr.f32.gmra.mrb[0].mxu0 %v425
    %v427 = vpop.f32.mrb[0].mxu0
    %v428 = vadd.f32 %v243, %v427
    %v429 = vpop.f32.mrb[0].mxu0
    %v430 = vadd.f32 %v245, %v429
    %431 = vmatprep.mubr.f32.mxu0 0.0
    %v432 = vand.u32 %v116, 4294901760
    %433 = vmatmul.mubr.f32.gmra.mrb[0].mxu0 %v432
    %v434 = vpop.f32.mrb[0].mxu0
    %v435 = vadd.f32 %v254, %v434
    %v436 = vpop.f32.mrb[0].mxu0
    %v437 = vadd.f32 %v256, %v436
    %438 = vmatprep.mubr.f32.mxu0 0.0
    %v439 = vand.u32 %v119, 4294901760
    %440 = vmatmul.mubr.f32.gmra.mrb[0].mxu0 %v439
    %v441 = vpop.f32.mrb[0].mxu0
    %v442 = vadd.f32 %v265, %v441
    %v443 = vpop.f32.mrb[0].mxu0
    %v444 = vadd.f32 %v267, %v443
    %445 = vmatprep.mubr.f32.mxu0 0.0
    %v446 = vand.u32 %v122, 4294901760
    %447 = vmatmul.mubr.f32.gmra.mrb[0].mxu0 %v446
    %v448 = vpop.f32.mrb[0].mxu0
    %v449 = vadd.f32 %v276, %v448
    %v450 = vpop.f32.mrb[0].mxu0
    %v451 = vadd.f32 %v278, %v450
    %452 = vmatprep.mubr.f32.mxu0 0.0
    %v453 = vand.u32 %v125, 4294901760
    %454 = vmatmul.mubr.f32.gmra.mrb[0].mxu0 %v453
    %v455 = vpop.f32.mrb[0].mxu0
    %v456 = vadd.f32 %v287, %v455
    %v457 = vpop.f32.mrb[0].mxu0
    %v458 = vadd.f32 %v289, %v457
    %459 = vmatprep.mubr.f32.mxu0 0.0
    %v460 = vand.u32 %v128, 4294901760
    %461 = vmatmul.mubr.f32.gmra.mrb[0].mxu0 %v460
    %v462 = vpop.f32.mrb[0].mxu0
    %v463 = vadd.f32 %v298, %v462
    %v464 = vpop.f32.mrb[0].mxu0
    %v465 = vadd.f32 %v300, %v464
    %466 = vmatprep.mubr.f32.mxu0 0.0
    %v467 = vand.u32 %v131, 4294901760
    %468 = vmatmul.mubr.f32.gmra.mrb[0].mxu0 %v467
    %v469 = vpop.f32.mrb[0].mxu0
    %v470 = vadd.f32 %v309, %v469
    %v471 = vpop.f32.mrb[0].mxu0
    %v472 = vadd.f32 %v311, %v471
    %473 = vdwg.mxu0
    %v474 = vand.u32 %v27, 4294901760
    %v475 = vsub.f32 %v27, %v474
    %476 = vmatprep.subr.mxu0 %v475
    %v477 = vand.u32 %v26, 4294901760
    %v478 = vsub.f32 %v26, %v477
    %479 = vmatpush1.msra.mxu0 %v478
    %v480 = vand.u32 %v33, 4294901760
    %v481 = vsub.f32 %v33, %v480
    %482 = vmatprep.subr.mxu0 %v481
    %v483 = vand.u32 %v32, 4294901760
    %v484 = vsub.f32 %v32, %v483
    %485 = vmatpush1.msra.mxu0 %v484
    %v486 = vand.u32 %v39, 4294901760
    %v487 = vsub.f32 %v39, %v486
    %488 = vmatprep.subr.mxu0 %v487
    %v489 = vand.u32 %v38, 4294901760
    %v490 = vsub.f32 %v38, %v489
    %491 = vmatpush1.msra.mxu0 %v490
    %v492 = vand.u32 %v138, 4294901760
    %v493 = vsub.f32 %v138, %v492
    %494 = vmatprep.subr.mxu0 %v493
    %v495 = vand.u32 %v135, 4294901760
    %v496 = vsub.f32 %v135, %v495
    %497 = vmatpush1.msra.mxu0 %v496
    %498 = vmatprep.subr.mxu0 0.0
    %499 = vmatpush1.msra.mxu0 0.0
    %500 = vmatprep.subr.mxu0 0.0
    %501 = vmatpush1.msra.mxu0 0.0
    %502 = vmatprep.subr.mxu0 0.0
    %503 = vmatpush1.msra.mxu0 0.0
    %504 = vmatprep.subr.mxu0 0.0
    %505 = vmatpush1.msra.mxu0 0.0
    %506 = vmatprep.subr.mxu0 0.0
    %507 = vmatpush1.msra.mxu0 0.0
    %508 = vmatprep.subr.mxu0 0.0
    %509 = vmatpush1.msra.mxu0 0.0
    %510 = vmatprep.subr.mxu0 0.0
    %511 = vmatpush1.msra.mxu0 0.0
    %512 = vmatprep.subr.mxu0 0.0
    %513 = vmatpush1.msra.mxu0 0.0
    %514 = vmatprep.subr.mxu0 0.0
    %515 = vmatpush1.msra.mxu0 0.0
    %516 = vmatprep.subr.mxu0 0.0
    %517 = vmatpush1.msra.mxu0 0.0
    %518 = vmatprep.subr.mxu0 0.0
    %519 = vmatpush1.msra.mxu0 0.0
    %520 = vmatprep.subr.mxu0 0.0
    %521 = vmatpush1.msra.mxu0 0.0
    %522 = vmatprep.subr.mxu0 0.0
    %523 = vmatpush1.msra.mxu0 0.0
    %524 = vmatprep.subr.mxu0 0.0
    %525 = vmatpush1.msra.mxu0 0.0
    %526 = vmatprep.subr.mxu0 0.0
    %527 = vmatpush1.msra.mxu0 0.0
    %528 = vmatprep.subr.mxu0 0.0
    %529 = vmatpush1.msra.mxu0 0.0
    %530 = vmatprep.subr.mxu0 0.0
    %531 = vmatpush1.msra.mxu0 0.0
    %532 = vmatprep.subr.mxu0 0.0
    %533 = vmatpush1.msra.mxu0 0.0
    %534 = vmatprep.subr.mxu0 0.0
    %535 = vmatpush1.msra.mxu0 0.0
    %536 = vmatprep.subr.mxu0 0.0
    %537 = vmatpush1.msra.mxu0 0.0
    %538 = vmatprep.subr.mxu0 0.0
    %539 = vmatpush1.msra.mxu0 0.0
    %540 = vmatprep.subr.mxu0 0.0
    %541 = vmatpush1.msra.mxu0 0.0
    %542 = vmatprep.subr.mxu0 0.0
    %543 = vmatpush1.msra.mxu0 0.0
    %544 = vmatprep.subr.mxu0 0.0
    %545 = vmatpush1.msra.mxu0 0.0
    %546 = vmatprep.subr.mxu0 0.0
    %547 = vmatpush1.msra.mxu0 0.0
    %548 = vmatprep.subr.mxu0 0.0
    %549 = vmatpush1.msra.mxu0 0.0
    %550 = vmatprep.subr.mxu0 0.0
    %551 = vmatpush1.msra.mxu0 0.0
    %552 = vmatprep.subr.mxu0 0.0
    %553 = vmatpush1.msra.mxu0 0.0
    %554 = vmatprep.mubr.f32.mxu0 0.0
    %v555 = vand.u32 %v110, 4294901760
    %v556 = vsub.f32 %v110, %v555
    %557 = vmatmul.mubr.f32.gmra.mrb[0].mxu0 %v556
    %v558 = vpop.f32.mrb[0].mxu0
    %v559 = vadd.f32 %v421, %v558
    %v560 = vpop.f32.mrb[0].mxu0
    %v561 = vadd.f32 %v423, %v560
    %562 = vmatprep.mubr.f32.mxu0 0.0
    %v563 = vand.u32 %v113, 4294901760
    %v564 = vsub.f32 %v113, %v563
    %565 = vmatmul.mubr.f32.gmra.mrb[0].mxu0 %v564
    %v566 = vpop.f32.mrb[0].mxu0
    %v567 = vadd.f32 %v428, %v566
    %v568 = vpop.f32.mrb[0].mxu0
    %v569 = vadd.f32 %v430, %v568
    %570 = vmatprep.mubr.f32.mxu0 0.0
    %v571 = vand.u32 %v116, 4294901760
    %v572 = vsub.f32 %v116, %v571
    %573 = vmatmul.mubr.f32.gmra.mrb[0].mxu0 %v572
    %v574 = vpop.f32.mrb[0].mxu0
    %v575 = vadd.f32 %v435, %v574
    %v576 = vpop.f32.mrb[0].mxu0
    %v577 = vadd.f32 %v437, %v576
    %578 = vmatprep.mubr.f32.mxu0 0.0
    %v579 = vand.u32 %v119, 4294901760
    %v580 = vsub.f32 %v119, %v579
    %581 = vmatmul.mubr.f32.gmra.mrb[0].mxu0 %v580
    %v582 = vpop.f32.mrb[0].mxu0
    %v583 = vadd.f32 %v442, %v582
    %v584 = vpop.f32.mrb[0].mxu0
    %v585 = vadd.f32 %v444, %v584
    %586 = vmatprep.mubr.f32.mxu0 0.0
    %v587 = vand.u32 %v122, 4294901760
    %v588 = vsub.f32 %v122, %v587
    %589 = vmatmul.mubr.f32.gmra.mrb[0].mxu0 %v588
    %v590 = vpop.f32.mrb[0].mxu0
    %v591 = vadd.f32 %v449, %v590
    %v592 = vpop.f32.mrb[0].mxu0
    %v593 = vadd.f32 %v451, %v592
    %594 = vmatprep.mubr.f32.mxu0 0.0
    %v595 = vand.u32 %v125, 4294901760
    %v596 = vsub.f32 %v125, %v595
    %597 = vmatmul.mubr.f32.gmra.mrb[0].mxu0 %v596
    %v598 = vpop.f32.mrb[0].mxu0
    %v599 = vadd.f32 %v456, %v598
    %v600 = vpop.f32.mrb[0].mxu0
    %v601 = vadd.f32 %v458, %v600
    %602 = vmatprep.mubr.f32.mxu0 0.0
    %v603 = vand.u32 %v128, 4294901760
    %v604 = vsub.f32 %v128, %v603
    %605 = vmatmul.mubr.f32.gmra.mrb[0].mxu0 %v604
    %v606 = vpop.f32.mrb[0].mxu0
    %v607 = vadd.f32 %v463, %v606
    %v608 = vpop.f32.mrb[0].mxu0
    %v609 = vadd.f32 %v465, %v608
    %610 = vmatprep.mubr.f32.mxu0 0.0
    %v611 = vand.u32 %v131, 4294901760
    %v612 = vsub.f32 %v131, %v611
    %613 = vmatmul.mubr.f32.gmra.mrb[0].mxu0 %v612
    %v614 = vpop.f32.mrb[0].mxu0
    %v615 = vadd.f32 %v470, %v614
    %v616 = vpop.f32.mrb[0].mxu0
    %v617 = vadd.f32 %v472, %v616
    %618 = vdwg.mxu0
    %v619 = vand.u32 %v27, 4294901760
    %620 = vmatprep.subr.mxu0 %v619
    %v621 = vand.u32 %v26, 4294901760
    %622 = vmatpush1.msra.mxu0 %v621
    %v623 = vand.u32 %v33, 4294901760
    %624 = vmatprep.subr.mxu0 %v623
    %v625 = vand.u32 %v32, 4294901760
    %626 = vmatpush1.msra.mxu0 %v625
    %v627 = vand.u32 %v39, 4294901760
    %628 = vmatprep.subr.mxu0 %v627
    %v629 = vand.u32 %v38, 4294901760
    %630 = vmatpush1.msra.mxu0 %v629
    %v631 = vand.u32 %v138, 4294901760
    %632 = vmatprep.subr.mxu0 %v631
    %v633 = vand.u32 %v135, 4294901760
    %634 = vmatpush1.msra.mxu0 %v633
    %635 = vmatprep.subr.mxu0 0.0
    %636 = vmatpush1.msra.mxu0 0.0
    %637 = vmatprep.subr.mxu0 0.0
    %638 = vmatpush1.msra.mxu0 0.0
    %639 = vmatprep.subr.mxu0 0.0
    %640 = vmatpush1.msra.mxu0 0.0
    %641 = vmatprep.subr.mxu0 0.0
    %642 = vmatpush1.msra.mxu0 0.0
    %643 = vmatprep.subr.mxu0 0.0
    %644 = vmatpush1.msra.mxu0 0.0
    %645 = vmatprep.subr.mxu0 0.0
    %646 = vmatpush1.msra.mxu0 0.0
    %647 = vmatprep.subr.mxu0 0.0
    %648 = vmatpush1.msra.mxu0 0.0
    %649 = vmatprep.subr.mxu0 0.0
    %650 = vmatpush1.msra.mxu0 0.0
    %651 = vmatprep.subr.mxu0 0.0
    %652 = vmatpush1.msra.mxu0 0.0
    %653 = vmatprep.subr.mxu0 0.0
    %654 = vmatpush1.msra.mxu0 0.0
    %655 = vmatprep.subr.mxu0 0.0
    %656 = vmatpush1.msra.mxu0 0.0
    %657 = vmatprep.subr.mxu0 0.0
    %658 = vmatpush1.msra.mxu0 0.0
    %659 = vmatprep.subr.mxu0 0.0
    %660 = vmatpush1.msra.mxu0 0.0
    %661 = vmatprep.subr.mxu0 0.0
    %662 = vmatpush1.msra.mxu0 0.0
    %663 = vmatprep.subr.mxu0 0.0
    %664 = vmatpush1.msra.mxu0 0.0
    %665 = vmatprep.subr.mxu0 0.0
    %666 = vmatpush1.msra.mxu0 0.0
    %667 = vmatprep.subr.mxu0 0.0
    %668 = vmatpush1.msra.mxu0 0.0
    %669 = vmatprep.subr.mxu0 0.0
    %670 = vmatpush1.msra.mxu0 0.0
    %671 = vmatprep.subr.mxu0 0.0
    %672 = vmatpush1.msra.mxu0 0.0
    %673 = vmatprep.subr.mxu0 0.0
    %674 = vmatpush1.msra.mxu0 0.0
    %675 = vmatprep.subr.mxu0 0.0
    %676 = vmatpush1.msra.mxu0 0.0
    %677 = vmatprep.subr.mxu0 0.0
    %678 = vmatpush1.msra.mxu0 0.0
    %679 = vmatprep.subr.mxu0 0.0
    %680 = vmatpush1.msra.mxu0 0.0
    %681 = vmatprep.subr.mxu0 0.0
    %682 = vmatpush1.msra.mxu0 0.0
    %683 = vmatprep.subr.mxu0 0.0
    %684 = vmatpush1.msra.mxu0 0.0
    %685 = vmatprep.subr.mxu0 0.0
    %686 = vmatpush1.msra.mxu0 0.0
    %687 = vmatprep.subr.mxu0 0.0
    %688 = vmatpush1.msra.mxu0 0.0
    %689 = vmatprep.subr.mxu0 0.0
    %690 = vmatpush1.msra.mxu0 0.0
    %691 = vmatprep.mubr.f32.mxu0 0.0
    %v692 = vand.u32 %v110, 4294901760
    %v693 = vsub.f32 %v110, %v692
    %v694 = vand.u32 %v693, 4294901760
    %695 = vmatmul.mubr.f32.gmra.mrb[0].mxu0 %v694
    %v696 = vpop.f32.mrb[0].mxu0
    %v697 = vadd.f32 %v559, %v696
    %v698 = vpop.f32.mrb[0].mxu0
    %v699 = vadd.f32 %v561, %v698
    %700 = vmatprep.mubr.f32.mxu0 0.0
    %v701 = vand.u32 %v113, 4294901760
    %v702 = vsub.f32 %v113, %v701
    %v703 = vand.u32 %v702, 4294901760
    %704 = vmatmul.mubr.f32.gmra.mrb[0].mxu0 %v703
    %v705 = vpop.f32.mrb[0].mxu0
    %v706 = vadd.f32 %v567, %v705
    %v707 = vpop.f32.mrb[0].mxu0
    %v708 = vadd.f32 %v569, %v707
    %709 = vmatprep.mubr.f32.mxu0 0.0
    %v710 = vand.u32 %v116, 4294901760
    %v711 = vsub.f32 %v116, %v710
    %v712 = vand.u32 %v711, 4294901760
    %713 = vmatmul.mubr.f32.gmra.mrb[0].mxu0 %v712
    %v714 = vpop.f32.mrb[0].mxu0
    %v715 = vadd.f32 %v575, %v714
    %v716 = vpop.f32.mrb[0].mxu0
    %v717 = vadd.f32 %v577, %v716
    %718 = vmatprep.mubr.f32.mxu0 0.0
    %v719 = vand.u32 %v119, 4294901760
    %v720 = vsub.f32 %v119, %v719
    %v721 = vand.u32 %v720, 4294901760
    %722 = vmatmul.mubr.f32.gmra.mrb[0].mxu0 %v721
    %v723 = vpop.f32.mrb[0].mxu0
    %v724 = vadd.f32 %v583, %v723
    %v725 = vpop.f32.mrb[0].mxu0
    %v726 = vadd.f32 %v585, %v725
    %727 = vmatprep.mubr.f32.mxu0 0.0
    %v728 = vand.u32 %v122, 4294901760
    %v729 = vsub.f32 %v122, %v728
    %v730 = vand.u32 %v729, 4294901760
    %731 = vmatmul.mubr.f32.gmra.mrb[0].mxu0 %v730
    %v732 = vpop.f32.mrb[0].mxu0
    %v733 = vadd.f32 %v591, %v732
    %v734 = vpop.f32.mrb[0].mxu0
    %v735 = vadd.f32 %v593, %v734
    %736 = vmatprep.mubr.f32.mxu0 0.0
    %v737 = vand.u32 %v125, 4294901760
    %v738 = vsub.f32 %v125, %v737
    %v739 = vand.u32 %v738, 4294901760
    %740 = vmatmul.mubr.f32.gmra.mrb[0].mxu0 %v739
    %v741 = vpop.f32.mrb[0].mxu0
    %v742 = vadd.f32 %v599, %v741
    %v743 = vpop.f32.mrb[0].mxu0
    %v744 = vadd.f32 %v601, %v743
    %745 = vmatprep.mubr.f32.mxu0 0.0
    %v746 = vand.u32 %v128, 4294901760
    %v747 = vsub.f32 %v128, %v746
    %v748 = vand.u32 %v747, 4294901760
    %749 = vmatmul.mubr.f32.gmra.mrb[0].mxu0 %v748
    %v750 = vpop.f32.mrb[0].mxu0
    %v751 = vadd.f32 %v607, %v750
    %v752 = vpop.f32.mrb[0].mxu0
    %v753 = vadd.f32 %v609, %v752
    %754 = vmatprep.mubr.f32.mxu0 0.0
    %v755 = vand.u32 %v131, 4294901760
    %v756 = vsub.f32 %v131, %v755
    %v757 = vand.u32 %v756, 4294901760
    %758 = vmatmul.mubr.f32.gmra.mrb[0].mxu0 %v757
    %v759 = vpop.f32.mrb[0].mxu0
    %v760 = vadd.f32 %v615, %v759
    %v761 = vpop.f32.mrb[0].mxu0
    %v762 = vadd.f32 %v617, %v761
    %763 = vdwg.mxu0
    %v764 = vand.u32 %v27, 4294901760
    %v765 = vsub.f32 %v27, %v764
    %v766 = vand.u32 %v765, 4294901760
    %767 = vmatprep.subr.mxu0 %v766
    %v768 = vand.u32 %v26, 4294901760
    %v769 = vsub.f32 %v26, %v768
    %v770 = vand.u32 %v769, 4294901760
    %771 = vmatpush1.msra.mxu0 %v770
    %v772 = vand.u32 %v33, 4294901760
    %v773 = vsub.f32 %v33, %v772
    %v774 = vand.u32 %v773, 4294901760
    %775 = vmatprep.subr.mxu0 %v774
    %v776 = vand.u32 %v32, 4294901760
    %v777 = vsub.f32 %v32, %v776
    %v778 = vand.u32 %v777, 4294901760
    %779 = vmatpush1.msra.mxu0 %v778
    %v780 = vand.u32 %v39, 4294901760
    %v781 = vsub.f32 %v39, %v780
    %v782 = vand.u32 %v781, 4294901760
    %783 = vmatprep.subr.mxu0 %v782
    %v784 = vand.u32 %v38, 4294901760
    %v785 = vsub.f32 %v38, %v784
    %v786 = vand.u32 %v785, 4294901760
    %787 = vmatpush1.msra.mxu0 %v786
    %v788 = vand.u32 %v138, 4294901760
    %v789 = vsub.f32 %v138, %v788
    %v790 = vand.u32 %v789, 4294901760
    %791 = vmatprep.subr.mxu0 %v790
    %v792 = vand.u32 %v135, 4294901760
    %v793 = vsub.f32 %v135, %v792
    %v794 = vand.u32 %v793, 4294901760
    %795 = vmatpush1.msra.mxu0 %v794
    %796 = vmatprep.subr.mxu0 0.0
    %797 = vmatpush1.msra.mxu0 0.0
    %798 = vmatprep.subr.mxu0 0.0
    %799 = vmatpush1.msra.mxu0 0.0
    %800 = vmatprep.subr.mxu0 0.0
    %801 = vmatpush1.msra.mxu0 0.0
    %802 = vmatprep.subr.mxu0 0.0
    %803 = vmatpush1.msra.mxu0 0.0
    %804 = vmatprep.subr.mxu0 0.0
    %805 = vmatpush1.msra.mxu0 0.0
    %806 = vmatprep.subr.mxu0 0.0
    %807 = vmatpush1.msra.mxu0 0.0
    %808 = vmatprep.subr.mxu0 0.0
    %809 = vmatpush1.msra.mxu0 0.0
    %810 = vmatprep.subr.mxu0 0.0
    %811 = vmatpush1.msra.mxu0 0.0
    %812 = vmatprep.subr.mxu0 0.0
    %813 = vmatpush1.msra.mxu0 0.0
    %814 = vmatprep.subr.mxu0 0.0
    %815 = vmatpush1.msra.mxu0 0.0
    %816 = vmatprep.subr.mxu0 0.0
    %817 = vmatpush1.msra.mxu0 0.0
    %818 = vmatprep.subr.mxu0 0.0
    %819 = vmatpush1.msra.mxu0 0.0
    %820 = vmatprep.subr.mxu0 0.0
    %821 = vmatpush1.msra.mxu0 0.0
    %822 = vmatprep.subr.mxu0 0.0
    %823 = vmatpush1.msra.mxu0 0.0
    %824 = vmatprep.subr.mxu0 0.0
    %825 = vmatpush1.msra.mxu0 0.0
    %826 = vmatprep.subr.mxu0 0.0
    %827 = vmatpush1.msra.mxu0 0.0
    %828 = vmatprep.subr.mxu0 0.0
    %829 = vmatpush1.msra.mxu0 0.0
    %830 = vmatprep.subr.mxu0 0.0
    %831 = vmatpush1.msra.mxu0 0.0
    %832 = vmatprep.subr.mxu0 0.0
    %833 = vmatpush1.msra.mxu0 0.0
    %834 = vmatprep.subr.mxu0 0.0
    %835 = vmatpush1.msra.mxu0 0.0
    %836 = vmatprep.subr.mxu0 0.0
    %837 = vmatpush1.msra.mxu0 0.0
    %838 = vmatprep.subr.mxu0 0.0
    %839 = vmatpush1.msra.mxu0 0.0
    %840 = vmatprep.subr.mxu0 0.0
    %841 = vmatpush1.msra.mxu0 0.0
    %842 = vmatprep.subr.mxu0 0.0
    %843 = vmatpush1.msra.mxu0 0.0
    %844 = vmatprep.subr.mxu0 0.0
    %845 = vmatpush1.msra.mxu0 0.0
    %846 = vmatprep.subr.mxu0 0.0
    %847 = vmatpush1.msra.mxu0 0.0
    %848 = vmatprep.subr.mxu0 0.0
    %849 = vmatpush1.msra.mxu0 0.0
    %850 = vmatprep.subr.mxu0 0.0
    %851 = vmatpush1.msra.mxu0 0.0
    %852 = vmatprep.mubr.f32.mxu0 0.0
    %v853 = vand.u32 %v110, 4294901760
    %854 = vmatmul.mubr.f32.gmra.mrb[0].mxu0 %v853
    %v855 = vpop.f32.mrb[0].mxu0
    %v856 = vadd.f32 %v697, %v855
    %v857 = vpop.f32.mrb[0].mxu0
    %v858 = vadd.f32 %v699, %v857
    %859 = vmatprep.mubr.f32.mxu0 0.0
    %v860 = vand.u32 %v113, 4294901760
    %861 = vmatmul.mubr.f32.gmra.mrb[0].mxu0 %v860
    %v862 = vpop.f32.mrb[0].mxu0
    %v863 = vadd.f32 %v706, %v862
    %v864 = vpop.f32.mrb[0].mxu0
    %v865 = vadd.f32 %v708, %v864
    %866 = vmatprep.mubr.f32.mxu0 0.0
    %v867 = vand.u32 %v116, 4294901760
    %868 = vmatmul.mubr.f32.gmra.mrb[0].mxu0 %v867
    %v869 = vpop.f32.mrb[0].mxu0
    %v870 = vadd.f32 %v715, %v869
    %v871 = vpop.f32.mrb[0].mxu0
    %v872 = vadd.f32 %v717, %v871
    %873 = vmatprep.mubr.f32.mxu0 0.0
    %v874 = vand.u32 %v119, 4294901760
    %875 = vmatmul.mubr.f32.gmra.mrb[0].mxu0 %v874
    %v876 = vpop.f32.mrb[0].mxu0
    %v877 = vadd.f32 %v724, %v876
    %v878 = vpop.f32.mrb[0].mxu0
    %v879 = vadd.f32 %v726, %v878
    %880 = vmatprep.mubr.f32.mxu0 0.0
    %v881 = vand.u32 %v122, 4294901760
    %882 = vmatmul.mubr.f32.gmra.mrb[0].mxu0 %v881
    %v883 = vpop.f32.mrb[0].mxu0
    %v884 = vadd.f32 %v733, %v883
    %v885 = vpop.f32.mrb[0].mxu0
    %v886 = vadd.f32 %v735, %v885
    %887 = vmatprep.mubr.f32.mxu0 0.0
    %v888 = vand.u32 %v125, 4294901760
    %889 = vmatmul.mubr.f32.gmra.mrb[0].mxu0 %v888
    %v890 = vpop.f32.mrb[0].mxu0
    %v891 = vadd.f32 %v742, %v890
    %v892 = vpop.f32.mrb[0].mxu0
    %v893 = vadd.f32 %v744, %v892
    %894 = vmatprep.mubr.f32.mxu0 0.0
    %v895 = vand.u32 %v128, 4294901760
    %896 = vmatmul.mubr.f32.gmra.mrb[0].mxu0 %v895
    %v897 = vpop.f32.mrb[0].mxu0
    %v898 = vadd.f32 %v751, %v897
    %v899 = vpop.f32.mrb[0].mxu0
    %v900 = vadd.f32 %v753, %v899
    %901 = vmatprep.mubr.f32.mxu0 0.0
    %v902 = vand.u32 %v131, 4294901760
    %903 = vmatmul.mubr.f32.gmra.mrb[0].mxu0 %v902
    %v904 = vpop.f32.mrb[0].mxu0
    %v905 = vadd.f32 %v760, %v904
    %v906 = vpop.f32.mrb[0].mxu0
    %v907 = vadd.f32 %v762, %v906
    %908 = vdwg.mxu0
    %v909 = vand.u32 %v27, 4294901760
    %910 = vmatprep.subr.mxu0 %v909
    %v911 = vand.u32 %v26, 4294901760
    %912 = vmatpush1.msra.mxu0 %v911
    %v913 = vand.u32 %v33, 4294901760
    %914 = vmatprep.subr.mxu0 %v913
    %v915 = vand.u32 %v32, 4294901760
    %916 = vmatpush1.msra.mxu0 %v915
    %v917 = vand.u32 %v39, 4294901760
    %918 = vmatprep.subr.mxu0 %v917
    %v919 = vand.u32 %v38, 4294901760
    %920 = vmatpush1.msra.mxu0 %v919
    %v921 = vand.u32 %v138, 4294901760
    %922 = vmatprep.subr.mxu0 %v921
    %v923 = vand.u32 %v135, 4294901760
    %924 = vmatpush1.msra.mxu0 %v923
    %925 = vmatprep.subr.mxu0 0.0
    %926 = vmatpush1.msra.mxu0 0.0
    %927 = vmatprep.subr.mxu0 0.0
    %928 = vmatpush1.msra.mxu0 0.0
    %929 = vmatprep.subr.mxu0 0.0
    %930 = vmatpush1.msra.mxu0 0.0
    %931 = vmatprep.subr.mxu0 0.0
    %932 = vmatpush1.msra.mxu0 0.0
    %933 = vmatprep.subr.mxu0 0.0
    %934 = vmatpush1.msra.mxu0 0.0
    %935 = vmatprep.subr.mxu0 0.0
    %936 = vmatpush1.msra.mxu0 0.0
    %937 = vmatprep.subr.mxu0 0.0
    %938 = vmatpush1.msra.mxu0 0.0
    %939 = vmatprep.subr.mxu0 0.0
    %940 = vmatpush1.msra.mxu0 0.0
    %941 = vmatprep.subr.mxu0 0.0
    %942 = vmatpush1.msra.mxu0 0.0
    %943 = vmatprep.subr.mxu0 0.0
    %944 = vmatpush1.msra.mxu0 0.0
    %945 = vmatprep.subr.mxu0 0.0
    %946 = vmatpush1.msra.mxu0 0.0
    %947 = vmatprep.subr.mxu0 0.0
    %948 = vmatpush1.msra.mxu0 0.0
    %949 = vmatprep.subr.mxu0 0.0
    %950 = vmatpush1.msra.mxu0 0.0
    %951 = vmatprep.subr.mxu0 0.0
    %952 = vmatpush1.msra.mxu0 0.0
    %953 = vmatprep.subr.mxu0 0.0
    %954 = vmatpush1.msra.mxu0 0.0
    %955 = vmatprep.subr.mxu0 0.0
    %956 = vmatpush1.msra.mxu0 0.0
    %957 = vmatprep.subr.mxu0 0.0
    %958 = vmatpush1.msra.mxu0 0.0
    %959 = vmatprep.subr.mxu0 0.0
    %960 = vmatpush1.msra.mxu0 0.0
    %961 = vmatprep.subr.mxu0 0.0
    %962 = vmatpush1.msra.mxu0 0.0
    %963 = vmatprep.subr.mxu0 0.0
    %964 = vmatpush1.msra.mxu0 0.0
    %965 = vmatprep.subr.mxu0 0.0
    %966 = vmatpush1.msra.mxu0 0.0
    %967 = vmatprep.subr.mxu0 0.0
    %968 = vmatpush1.msra.mxu0 0.0
    %969 = vmatprep.subr.mxu0 0.0
    %970 = vmatpush1.msra.mxu0 0.0
    %971 = vmatprep.subr.mxu0 0.0
    %972 = vmatpush1.msra.mxu0 0.0
    %973 = vmatprep.subr.mxu0 0.0
    %974 = vmatpush1.msra.mxu0 0.0
    %975 = vmatprep.subr.mxu0 0.0
    %976 = vmatpush1.msra.mxu0 0.0
    %977 = vmatprep.subr.mxu0 0.0
    %978 = vmatpush1.msra.mxu0 0.0
    %979 = vmatprep.subr.mxu0 0.0
    %980 = vmatpush1.msra.mxu0 0.0
    %981 = vmatprep.mubr.f32.mxu0 0.0
    %v982 = vand.u32 %v110, 4294901760
    %983 = vmatmul.mubr.f32.gmra.mrb[0].mxu0 %v982
    %v984 = vpop.f32.mrb[0].mxu0
    %v985 = vadd.f32 %v856, %v984
    %v986 = vpop.f32.mrb[0].mxu0
    %v987 = vadd.f32 %v858, %v986
    %988 = vmatprep.mubr.f32.mxu0 0.0
    %v989 = vand.u32 %v113, 4294901760
    %990 = vmatmul.mubr.f32.gmra.mrb[0].mxu0 %v989
    %v991 = vpop.f32.mrb[0].mxu0
    %v992 = vadd.f32 %v863, %v991
    %v993 = vpop.f32.mrb[0].mxu0
    %v994 = vadd.f32 %v865, %v993
    %995 = vmatprep.mubr.f32.mxu0 0.0
    %v996 = vand.u32 %v116, 4294901760
    %997 = vmatmul.mubr.f32.gmra.mrb[0].mxu0 %v996
    %v998 = vpop.f32.mrb[0].mxu0
    %v999 = vadd.f32 %v870, %v998
    %v1000 = vpop.f32.mrb[0].mxu0
    %v1001 = vadd.f32 %v872, %v1000
    %1002 = vmatprep.mubr.f32.mxu0 0.0
    %v1003 = vand.u32 %v119, 4294901760
    %1004 = vmatmul.mubr.f32.gmra.mrb[0].mxu0 %v1003
    %v1005 = vpop.f32.mrb[0].mxu0
    %v1006 = vadd.f32 %v877, %v1005
    %v1007 = vpop.f32.mrb[0].mxu0
    %v1008 = vadd.f32 %v879, %v1007
    %1009 = vmatprep.mubr.f32.mxu0 0.0
    %v1010 = vand.u32 %v122, 4294901760
    %1011 = vmatmul.mubr.f32.gmra.mrb[0].mxu0 %v1010
    %v1012 = vpop.f32.mrb[0].mxu0
    %v1013 = vadd.f32 %v884, %v1012
    %v1014 = vpop.f32.mrb[0].mxu0
    %v1015 = vadd.f32 %v886, %v1014
    %1016 = vmatprep.mubr.f32.mxu0 0.0
    %v1017 = vand.u32 %v125, 4294901760
    %1018 = vmatmul.mubr.f32.gmra.mrb[0].mxu0 %v1017
    %v1019 = vpop.f32.mrb[0].mxu0
    %v1020 = vadd.f32 %v891, %v1019
    %v1021 = vpop.f32.mrb[0].mxu0
    %v1022 = vadd.f32 %v893, %v1021
    %1023 = vmatprep.mubr.f32.mxu0 0.0
    %v1024 = vand.u32 %v128, 4294901760
    %1025 = vmatmul.mubr.f32.gmra.mrb[0].mxu0 %v1024
    %v1026 = vpop.f32.mrb[0].mxu0
    %v1027 = vadd.f32 %v898, %v1026
    %v1028 = vpop.f32.mrb[0].mxu0
    %v1029 = vadd.f32 %v900, %v1028
    %1030 = vmatprep.mubr.f32.mxu0 0.0
    %v1031 = vand.u32 %v131, 4294901760
    %1032 = vmatmul.mubr.f32.gmra.mrb[0].mxu0 %v1031
    %v1033 = vpop.f32.mrb[0].mxu0
    %v1034 = vadd.f32 %v905, %v1033
    %v1035 = vpop.f32.mrb[0].mxu0
    %v1036 = vadd.f32 %v907, %v1035
    %1037 = vdwg.mxu0
    %v1038 = vand.u32 %v29, 4294901760
    %1039 = vmatprep.subr.mxu0 %v1038
    %v1040 = vand.u32 %v28, 4294901760
    %1041 = vmatpush1.msra.mxu0 %v1040
    %v1042 = vand.u32 %v35, 4294901760
    %1043 = vmatprep.subr.mxu0 %v1042
    %v1044 = vand.u32 %v34, 4294901760
    %1045 = vmatpush1.msra.mxu0 %v1044
    %v1046 = vand.u32 %v41, 4294901760
    %1047 = vmatprep.subr.mxu0 %v1046
    %v1048 = vand.u32 %v40, 4294901760
    %1049 = vmatpush1.msra.mxu0 %v1048
    %v1050 = vand.u32 %v144, 4294901760
    %1051 = vmatprep.subr.mxu0 %v1050
    %v1052 = vand.u32 %v141, 4294901760
    %1053 = vmatpush1.msra.mxu0 %v1052
    %1054 = vmatprep.subr.mxu0 0.0
    %1055 = vmatpush1.msra.mxu0 0.0
    %1056 = vmatprep.subr.mxu0 0.0
    %1057 = vmatpush1.msra.mxu0 0.0
    %1058 = vmatprep.subr.mxu0 0.0
    %1059 = vmatpush1.msra.mxu0 0.0
    %1060 = vmatprep.subr.mxu0 0.0
    %1061 = vmatpush1.msra.mxu0 0.0
    %1062 = vmatprep.subr.mxu0 0.0
    %1063 = vmatpush1.msra.mxu0 0.0
    %1064 = vmatprep.subr.mxu0 0.0
    %1065 = vmatpush1.msra.mxu0 0.0
    %1066 = vmatprep.subr.mxu0 0.0
    %1067 = vmatpush1.msra.mxu0 0.0
    %1068 = vmatprep.subr.mxu0 0.0
    %1069 = vmatpush1.msra.mxu0 0.0
    %1070 = vmatprep.subr.mxu0 0.0
    %1071 = vmatpush1.msra.mxu0 0.0
    %1072 = vmatprep.subr.mxu0 0.0
    %1073 = vmatpush1.msra.mxu0 0.0
    %1074 = vmatprep.subr.mxu0 0.0
    %1075 = vmatpush1.msra.mxu0 0.0
    %1076 = vmatprep.subr.mxu0 0.0
    %1077 = vmatpush1.msra.mxu0 0.0
    %1078 = vmatprep.subr.mxu0 0.0
    %1079 = vmatpush1.msra.mxu0 0.0
    %1080 = vmatprep.subr.mxu0 0.0
    %1081 = vmatpush1.msra.mxu0 0.0
    %1082 = vmatprep.subr.mxu0 0.0
    %1083 = vmatpush1.msra.mxu0 0.0
    %1084 = vmatprep.subr.mxu0 0.0
    %1085 = vmatpush1.msra.mxu0 0.0
    %1086 = vmatprep.subr.mxu0 0.0
    %1087 = vmatpush1.msra.mxu0 0.0
    %1088 = vmatprep.subr.mxu0 0.0
    %1089 = vmatpush1.msra.mxu0 0.0
    %1090 = vmatprep.subr.mxu0 0.0
    %1091 = vmatpush1.msra.mxu0 0.0
    %1092 = vmatprep.subr.mxu0 0.0
    %1093 = vmatpush1.msra.mxu0 0.0
    %1094 = vmatprep.subr.mxu0 0.0
    %1095 = vmatpush1.msra.mxu0 0.0
    %1096 = vmatprep.subr.mxu0 0.0
    %1097 = vmatpush1.msra.mxu0 0.0
    %1098 = vmatprep.subr.mxu0 0.0
    %1099 = vmatpush1.msra.mxu0 0.0
    %1100 = vmatprep.subr.mxu0 0.0
    %1101 = vmatpush1.msra.mxu0 0.0
    %1102 = vmatprep.subr.mxu0 0.0
    %1103 = vmatpush1.msra.mxu0 0.0
    %1104 = vmatprep.subr.mxu0 0.0
    %1105 = vmatpush1.msra.mxu0 0.0
    %1106 = vmatprep.subr.mxu0 0.0
    %1107 = vmatpush1.msra.mxu0 0.0
    %1108 = vmatprep.subr.mxu0 0.0
    %1109 = vmatpush1.msra.mxu0 0.0
    %1110 = vmatprep.mubr.f32.mxu0 0.0
    %v1111 = vand.u32 %v110, 4294901760
    %v1112 = vsub.f32 %v110, %v1111
    %v1113 = vand.u32 %v1112, 4294901760
    %v1114 = vsub.f32 %v1112, %v1113
    %v1115 = vand.u32 %v1114, 4294901760
    %1116 = vmatmul.mubr.f32.gmra.mrb[0].mxu0 %v1115
    %v1117 = vpop.f32.mrb[0].mxu0
    %v1118 = vadd.f32 0.0, %v1117
    %v1119 = vpop.f32.mrb[0].mxu0
    %v1120 = vadd.f32 0.0, %v1119
    %1121 = vmatprep.mubr.f32.mxu0 0.0
    %v1122 = vand.u32 %v113, 4294901760
    %v1123 = vsub.f32 %v113, %v1122
    %v1124 = vand.u32 %v1123, 4294901760
    %v1125 = vsub.f32 %v1123, %v1124
    %v1126 = vand.u32 %v1125, 4294901760
    %1127 = vmatmul.mubr.f32.gmra.mrb[0].mxu0 %v1126
    %v1128 = vpop.f32.mrb[0].mxu0
    %v1129 = vadd.f32 0.0, %v1128
    %v1130 = vpop.f32.mrb[0].mxu0
    %v1131 = vadd.f32 0.0, %v1130
    %1132 = vmatprep.mubr.f32.mxu0 0.0
    %v1133 = vand.u32 %v116, 4294901760
    %v1134 = vsub.f32 %v116, %v1133
    %v1135 = vand.u32 %v1134, 4294901760
    %v1136 = vsub.f32 %v1134, %v1135
    %v1137 = vand.u32 %v1136, 4294901760
    %1138 = vmatmul.mubr.f32.gmra.mrb[0].mxu0 %v1137
    %v1139 = vpop.f32.mrb[0].mxu0
    %v1140 = vadd.f32 0.0, %v1139
    %v1141 = vpop.f32.mrb[0].mxu0
    %v1142 = vadd.f32 0.0, %v1141
    %1143 = vmatprep.mubr.f32.mxu0 0.0
    %v1144 = vand.u32 %v119, 4294901760
    %v1145 = vsub.f32 %v119, %v1144
    %v1146 = vand.u32 %v1145, 4294901760
    %v1147 = vsub.f32 %v1145, %v1146
    %v1148 = vand.u32 %v1147, 4294901760
    %1149 = vmatmul.mubr.f32.gmra.mrb[0].mxu0 %v1148
    %v1150 = vpop.f32.mrb[0].mxu0
    %v1151 = vadd.f32 0.0, %v1150
    %v1152 = vpop.f32.mrb[0].mxu0
    %v1153 = vadd.f32 0.0, %v1152
    %1154 = vmatprep.mubr.f32.mxu0 0.0
    %v1155 = vand.u32 %v122, 4294901760
    %v1156 = vsub.f32 %v122, %v1155
    %v1157 = vand.u32 %v1156, 4294901760
    %v1158 = vsub.f32 %v1156, %v1157
    %v1159 = vand.u32 %v1158, 4294901760
    %1160 = vmatmul.mubr.f32.gmra.mrb[0].mxu0 %v1159
    %v1161 = vpop.f32.mrb[0].mxu0
    %v1162 = vadd.f32 0.0, %v1161
    %v1163 = vpop.f32.mrb[0].mxu0
    %v1164 = vadd.f32 0.0, %v1163
    %1165 = vmatprep.mubr.f32.mxu0 0.0
    %v1166 = vand.u32 %v125, 4294901760
    %v1167 = vsub.f32 %v125, %v1166
    %v1168 = vand.u32 %v1167, 4294901760
    %v1169 = vsub.f32 %v1167, %v1168
    %v1170 = vand.u32 %v1169, 4294901760
    %1171 = vmatmul.mubr.f32.gmra.mrb[0].mxu0 %v1170
    %v1172 = vpop.f32.mrb[0].mxu0
    %v1173 = vadd.f32 0.0, %v1172
    %v1174 = vpop.f32.mrb[0].mxu0
    %v1175 = vadd.f32 0.0, %v1174
    %1176 = vmatprep.mubr.f32.mxu0 0.0
    %v1177 = vand.u32 %v128, 4294901760
    %v1178 = vsub.f32 %v128, %v1177
    %v1179 = vand.u32 %v1178, 4294901760
    %v1180 = vsub.f32 %v1178, %v1179
    %v1181 = vand.u32 %v1180, 4294901760
    %1182 = vmatmul.mubr.f32.gmra.mrb[0].mxu0 %v1181
    %v1183 = vpop.f32.mrb[0].mxu0
    %v1184 = vadd.f32 0.0, %v1183
    %v1185 = vpop.f32.mrb[0].mxu0
    %v1186 = vadd.f32 0.0, %v1185
    %1187 = vmatprep.mubr.f32.mxu0 0.0
    %v1188 = vand.u32 %v131, 4294901760
    %v1189 = vsub.f32 %v131, %v1188
    %v1190 = vand.u32 %v1189, 4294901760
    %v1191 = vsub.f32 %v1189, %v1190
    %v1192 = vand.u32 %v1191, 4294901760
    %1193 = vmatmul.mubr.f32.gmra.mrb[0].mxu0 %v1192
    %v1194 = vpop.f32.mrb[0].mxu0
    %v1195 = vadd.f32 0.0, %v1194
    %v1196 = vpop.f32.mrb[0].mxu0
    %v1197 = vadd.f32 0.0, %v1196
    %1198 = vdwg.mxu0
    %v1199 = vand.u32 %v29, 4294901760
    %v1200 = vsub.f32 %v29, %v1199
    %v1201 = vand.u32 %v1200, 4294901760
    %v1202 = vsub.f32 %v1200, %v1201
    %v1203 = vand.u32 %v1202, 4294901760
    %1204 = vmatprep.subr.mxu0 %v1203
    %v1205 = vand.u32 %v28, 4294901760
    %v1206 = vsub.f32 %v28, %v1205
    %v1207 = vand.u32 %v1206, 4294901760
    %v1208 = vsub.f32 %v1206, %v1207
    %v1209 = vand.u32 %v1208, 4294901760
    %1210 = vmatpush1.msra.mxu0 %v1209
    %v1211 = vand.u32 %v35, 4294901760
    %v1212 = vsub.f32 %v35, %v1211
    %v1213 = vand.u32 %v1212, 4294901760
    %v1214 = vsub.f32 %v1212, %v1213
    %v1215 = vand.u32 %v1214, 4294901760
    %1216 = vmatprep.subr.mxu0 %v1215
    %v1217 = vand.u32 %v34, 4294901760
    %v1218 = vsub.f32 %v34, %v1217
    %v1219 = vand.u32 %v1218, 4294901760
    %v1220 = vsub.f32 %v1218, %v1219
    %v1221 = vand.u32 %v1220, 4294901760
    %1222 = vmatpush1.msra.mxu0 %v1221
    %v1223 = vand.u32 %v41, 4294901760
    %v1224 = vsub.f32 %v41, %v1223
    %v1225 = vand.u32 %v1224, 4294901760
    %v1226 = vsub.f32 %v1224, %v1225
    %v1227 = vand.u32 %v1226, 4294901760
    %1228 = vmatprep.subr.mxu0 %v1227
    %v1229 = vand.u32 %v40, 4294901760
    %v1230 = vsub.f32 %v40, %v1229
    %v1231 = vand.u32 %v1230, 4294901760
    %v1232 = vsub.f32 %v1230, %v1231
    %v1233 = vand.u32 %v1232, 4294901760
    %1234 = vmatpush1.msra.mxu0 %v1233
    %v1235 = vand.u32 %v144, 4294901760
    %v1236 = vsub.f32 %v144, %v1235
    %v1237 = vand.u32 %v1236, 4294901760
    %v1238 = vsub.f32 %v1236, %v1237
    %v1239 = vand.u32 %v1238, 4294901760
    %1240 = vmatprep.subr.mxu0 %v1239
    %v1241 = vand.u32 %v141, 4294901760
    %v1242 = vsub.f32 %v141, %v1241
    %v1243 = vand.u32 %v1242, 4294901760
    %v1244 = vsub.f32 %v1242, %v1243
    %v1245 = vand.u32 %v1244, 4294901760
    %1246 = vmatpush1.msra.mxu0 %v1245
    %1247 = vmatprep.subr.mxu0 0.0
    %1248 = vmatpush1.msra.mxu0 0.0
    %1249 = vmatprep.subr.mxu0 0.0
    %1250 = vmatpush1.msra.mxu0 0.0
    %1251 = vmatprep.subr.mxu0 0.0
    %1252 = vmatpush1.msra.mxu0 0.0
    %1253 = vmatprep.subr.mxu0 0.0
    %1254 = vmatpush1.msra.mxu0 0.0
    %1255 = vmatprep.subr.mxu0 0.0
    %1256 = vmatpush1.msra.mxu0 0.0
    %1257 = vmatprep.subr.mxu0 0.0
    %1258 = vmatpush1.msra.mxu0 0.0
    %1259 = vmatprep.subr.mxu0 0.0
    %1260 = vmatpush1.msra.mxu0 0.0
    %1261 = vmatprep.subr.mxu0 0.0
    %1262 = vmatpush1.msra.mxu0 0.0
    %1263 = vmatprep.subr.mxu0 0.0
    %1264 = vmatpush1.msra.mxu0 0.0
    %1265 = vmatprep.subr.mxu0 0.0
    %1266 = vmatpush1.msra.mxu0 0.0
    %1267 = vmatprep.subr.mxu0 0.0
    %1268 = vmatpush1.msra.mxu0 0.0
    %1269 = vmatprep.subr.mxu0 0.0
    %1270 = vmatpush1.msra.mxu0 0.0
    %1271 = vmatprep.subr.mxu0 0.0
    %1272 = vmatpush1.msra.mxu0 0.0
    %1273 = vmatprep.subr.mxu0 0.0
    %1274 = vmatpush1.msra.mxu0 0.0
    %1275 = vmatprep.subr.mxu0 0.0
    %1276 = vmatpush1.msra.mxu0 0.0
    %1277 = vmatprep.subr.mxu0 0.0
    %1278 = vmatpush1.msra.mxu0 0.0
    %1279 = vmatprep.subr.mxu0 0.0
    %1280 = vmatpush1.msra.mxu0 0.0
    %1281 = vmatprep.subr.mxu0 0.0
    %1282 = vmatpush1.msra.mxu0 0.0
    %1283 = vmatprep.subr.mxu0 0.0
    %1284 = vmatpush1.msra.mxu0 0.0
    %1285 = vmatprep.subr.mxu0 0.0
    %1286 = vmatpush1.msra.mxu0 0.0
    %1287 = vmatprep.subr.mxu0 0.0
    %1288 = vmatpush1.msra.mxu0 0.0
    %1289 = vmatprep.subr.mxu0 0.0
    %1290 = vmatpush1.msra.mxu0 0.0
    %1291 = vmatprep.subr.mxu0 0.0
    %1292 = vmatpush1.msra.mxu0 0.0
    %1293 = vmatprep.subr.mxu0 0.0
    %1294 = vmatpush1.msra.mxu0 0.0
    %1295 = vmatprep.subr.mxu0 0.0
    %1296 = vmatpush1.msra.mxu0 0.0
    %1297 = vmatprep.subr.mxu0 0.0
    %1298 = vmatpush1.msra.mxu0 0.0
    %1299 = vmatprep.subr.mxu0 0.0
    %1300 = vmatpush1.msra.mxu0 0.0
    %1301 = vmatprep.subr.mxu0 0.0
    %1302 = vmatpush1.msra.mxu0 0.0
    %1303 = vmatprep.mubr.f32.mxu0 0.0
    %v1304 = vand.u32 %v110, 4294901760
    %1305 = vmatmul.mubr.f32.gmra.mrb[0].mxu0 %v1304
    %v1306 = vpop.f32.mrb[0].mxu0
    %v1307 = vadd.f32 %v1118, %v1306
    %v1308 = vpop.f32.mrb[0].mxu0
    %v1309 = vadd.f32 %v1120, %v1308
    %1310 = vmatprep.mubr.f32.mxu0 0.0
    %v1311 = vand.u32 %v113, 4294901760
    %1312 = vmatmul.mubr.f32.gmra.mrb[0].mxu0 %v1311
    %v1313 = vpop.f32.mrb[0].mxu0
    %v1314 = vadd.f32 %v1129, %v1313
    %v1315 = vpop.f32.mrb[0].mxu0
    %v1316 = vadd.f32 %v1131, %v1315
    %1317 = vmatprep.mubr.f32.mxu0 0.0
    %v1318 = vand.u32 %v116, 4294901760
    %1319 = vmatmul.mubr.f32.gmra.mrb[0].mxu0 %v1318
    %v1320 = vpop.f32.mrb[0].mxu0
    %v1321 = vadd.f32 %v1140, %v1320
    %v1322 = vpop.f32.mrb[0].mxu0
    %v1323 = vadd.f32 %v1142, %v1322
    %1324 = vmatprep.mubr.f32.mxu0 0.0
    %v1325 = vand.u32 %v119, 4294901760
    %1326 = vmatmul.mubr.f32.gmra.mrb[0].mxu0 %v1325
    %v1327 = vpop.f32.mrb[0].mxu0
    %v1328 = vadd.f32 %v1151, %v1327
    %v1329 = vpop.f32.mrb[0].mxu0
    %v1330 = vadd.f32 %v1153, %v1329
    %1331 = vmatprep.mubr.f32.mxu0 0.0
    %v1332 = vand.u32 %v122, 4294901760
    %1333 = vmatmul.mubr.f32.gmra.mrb[0].mxu0 %v1332
    %v1334 = vpop.f32.mrb[0].mxu0
    %v1335 = vadd.f32 %v1162, %v1334
    %v1336 = vpop.f32.mrb[0].mxu0
    %v1337 = vadd.f32 %v1164, %v1336
    %1338 = vmatprep.mubr.f32.mxu0 0.0
    %v1339 = vand.u32 %v125, 4294901760
    %1340 = vmatmul.mubr.f32.gmra.mrb[0].mxu0 %v1339
    %v1341 = vpop.f32.mrb[0].mxu0
    %v1342 = vadd.f32 %v1173, %v1341
    %v1343 = vpop.f32.mrb[0].mxu0
    %v1344 = vadd.f32 %v1175, %v1343
    %1345 = vmatprep.mubr.f32.mxu0 0.0
    %v1346 = vand.u32 %v128, 4294901760
    %1347 = vmatmul.mubr.f32.gmra.mrb[0].mxu0 %v1346
    %v1348 = vpop.f32.mrb[0].mxu0
    %v1349 = vadd.f32 %v1184, %v1348
    %v1350 = vpop.f32.mrb[0].mxu0
    %v1351 = vadd.f32 %v1186, %v1350
    %1352 = vmatprep.mubr.f32.mxu0 0.0
    %v1353 = vand.u32 %v131, 4294901760
    %1354 = vmatmul.mubr.f32.gmra.mrb[0].mxu0 %v1353
    %v1355 = vpop.f32.mrb[0].mxu0
    %v1356 = vadd.f32 %v1195, %v1355
    %v1357 = vpop.f32.mrb[0].mxu0
    %v1358 = vadd.f32 %v1197, %v1357
    %1359 = vdwg.mxu0
    %v1360 = vand.u32 %v29, 4294901760
    %v1361 = vsub.f32 %v29, %v1360
    %1362 = vmatprep.subr.mxu0 %v1361
    %v1363 = vand.u32 %v28, 4294901760
    %v1364 = vsub.f32 %v28, %v1363
    %1365 = vmatpush1.msra.mxu0 %v1364
    %v1366 = vand.u32 %v35, 4294901760
    %v1367 = vsub.f32 %v35, %v1366
    %1368 = vmatprep.subr.mxu0 %v1367
    %v1369 = vand.u32 %v34, 4294901760
    %v1370 = vsub.f32 %v34, %v1369
    %1371 = vmatpush1.msra.mxu0 %v1370
    %v1372 = vand.u32 %v41, 4294901760
    %v1373 = vsub.f32 %v41, %v1372
    %1374 = vmatprep.subr.mxu0 %v1373
    %v1375 = vand.u32 %v40, 4294901760
    %v1376 = vsub.f32 %v40, %v1375
    %1377 = vmatpush1.msra.mxu0 %v1376
    %v1378 = vand.u32 %v144, 4294901760
    %v1379 = vsub.f32 %v144, %v1378
    %1380 = vmatprep.subr.mxu0 %v1379
    %v1381 = vand.u32 %v141, 4294901760
    %v1382 = vsub.f32 %v141, %v1381
    %1383 = vmatpush1.msra.mxu0 %v1382
    %1384 = vmatprep.subr.mxu0 0.0
    %1385 = vmatpush1.msra.mxu0 0.0
    %1386 = vmatprep.subr.mxu0 0.0
    %1387 = vmatpush1.msra.mxu0 0.0
    %1388 = vmatprep.subr.mxu0 0.0
    %1389 = vmatpush1.msra.mxu0 0.0
    %1390 = vmatprep.subr.mxu0 0.0
    %1391 = vmatpush1.msra.mxu0 0.0
    %1392 = vmatprep.subr.mxu0 0.0
    %1393 = vmatpush1.msra.mxu0 0.0
    %1394 = vmatprep.subr.mxu0 0.0
    %1395 = vmatpush1.msra.mxu0 0.0
    %1396 = vmatprep.subr.mxu0 0.0
    %1397 = vmatpush1.msra.mxu0 0.0
    %1398 = vmatprep.subr.mxu0 0.0
    %1399 = vmatpush1.msra.mxu0 0.0
    %1400 = vmatprep.subr.mxu0 0.0
    %1401 = vmatpush1.msra.mxu0 0.0
    %1402 = vmatprep.subr.mxu0 0.0
    %1403 = vmatpush1.msra.mxu0 0.0
    %1404 = vmatprep.subr.mxu0 0.0
    %1405 = vmatpush1.msra.mxu0 0.0
    %1406 = vmatprep.subr.mxu0 0.0
    %1407 = vmatpush1.msra.mxu0 0.0
    %1408 = vmatprep.subr.mxu0 0.0
    %1409 = vmatpush1.msra.mxu0 0.0
    %1410 = vmatprep.subr.mxu0 0.0
    %1411 = vmatpush1.msra.mxu0 0.0
    %1412 = vmatprep.subr.mxu0 0.0
    %1413 = vmatpush1.msra.mxu0 0.0
    %1414 = vmatprep.subr.mxu0 0.0
    %1415 = vmatpush1.msra.mxu0 0.0
    %1416 = vmatprep.subr.mxu0 0.0
    %1417 = vmatpush1.msra.mxu0 0.0
    %1418 = vmatprep.subr.mxu0 0.0
    %1419 = vmatpush1.msra.mxu0 0.0
    %1420 = vmatprep.subr.mxu0 0.0
    %1421 = vmatpush1.msra.mxu0 0.0
    %1422 = vmatprep.subr.mxu0 0.0
    %1423 = vmatpush1.msra.mxu0 0.0
    %1424 = vmatprep.subr.mxu0 0.0
    %1425 = vmatpush1.msra.mxu0 0.0
    %1426 = vmatprep.subr.mxu0 0.0
    %1427 = vmatpush1.msra.mxu0 0.0
    %1428 = vmatprep.subr.mxu0 0.0
    %1429 = vmatpush1.msra.mxu0 0.0
    %1430 = vmatprep.subr.mxu0 0.0
    %1431 = vmatpush1.msra.mxu0 0.0
    %1432 = vmatprep.subr.mxu0 0.0
    %1433 = vmatpush1.msra.mxu0 0.0
    %1434 = vmatprep.subr.mxu0 0.0
    %1435 = vmatpush1.msra.mxu0 0.0
    %1436 = vmatprep.subr.mxu0 0.0
    %1437 = vmatpush1.msra.mxu0 0.0
    %1438 = vmatprep.subr.mxu0 0.0
    %1439 = vmatpush1.msra.mxu0 0.0
    %1440 = vmatprep.mubr.f32.mxu0 0.0
    %v1441 = vand.u32 %v110, 4294901760
    %v1442 = vsub.f32 %v110, %v1441
    %1443 = vmatmul.mubr.f32.gmra.mrb[0].mxu0 %v1442
    %v1444 = vpop.f32.mrb[0].mxu0
    %v1445 = vadd.f32 %v1307, %v1444
    %v1446 = vpop.f32.mrb[0].mxu0
    %v1447 = vadd.f32 %v1309, %v1446
    %1448 = vmatprep.mubr.f32.mxu0 0.0
    %v1449 = vand.u32 %v113, 4294901760
    %v1450 = vsub.f32 %v113, %v1449
    %1451 = vmatmul.mubr.f32.gmra.mrb[0].mxu0 %v1450
    %v1452 = vpop.f32.mrb[0].mxu0
    %v1453 = vadd.f32 %v1314, %v1452
    %v1454 = vpop.f32.mrb[0].mxu0
    %v1455 = vadd.f32 %v1316, %v1454
    %1456 = vmatprep.mubr.f32.mxu0 0.0
    %v1457 = vand.u32 %v116, 4294901760
    %v1458 = vsub.f32 %v116, %v1457
    %1459 = vmatmul.mubr.f32.gmra.mrb[0].mxu0 %v1458
    %v1460 = vpop.f32.mrb[0].mxu0
    %v1461 = vadd.f32 %v1321, %v1460
    %v1462 = vpop.f32.mrb[0].mxu0
    %v1463 = vadd.f32 %v1323, %v1462
    %1464 = vmatprep.mubr.f32.mxu0 0.0
    %v1465 = vand.u32 %v119, 4294901760
    %v1466 = vsub.f32 %v119, %v1465
    %1467 = vmatmul.mubr.f32.gmra.mrb[0].mxu0 %v1466
    %v1468 = vpop.f32.mrb[0].mxu0
    %v1469 = vadd.f32 %v1328, %v1468
    %v1470 = vpop.f32.mrb[0].mxu0
    %v1471 = vadd.f32 %v1330, %v1470
    %1472 = vmatprep.mubr.f32.mxu0 0.0
    %v1473 = vand.u32 %v122, 4294901760
    %v1474 = vsub.f32 %v122, %v1473
    %1475 = vmatmul.mubr.f32.gmra.mrb[0].mxu0 %v1474
    %v1476 = vpop.f32.mrb[0].mxu0
    %v1477 = vadd.f32 %v1335, %v1476
    %v1478 = vpop.f32.mrb[0].mxu0
    %v1479 = vadd.f32 %v1337, %v1478
    %1480 = vmatprep.mubr.f32.mxu0 0.0
    %v1481 = vand.u32 %v125, 4294901760
    %v1482 = vsub.f32 %v125, %v1481
    %1483 = vmatmul.mubr.f32.gmra.mrb[0].mxu0 %v1482
    %v1484 = vpop.f32.mrb[0].mxu0
    %v1485 = vadd.f32 %v1342, %v1484
    %v1486 = vpop.f32.mrb[0].mxu0
    %v1487 = vadd.f32 %v1344, %v1486
    %1488 = vmatprep.mubr.f32.mxu0 0.0
    %v1489 = vand.u32 %v128, 4294901760
    %v1490 = vsub.f32 %v128, %v1489
    %1491 = vmatmul.mubr.f32.gmra.mrb[0].mxu0 %v1490
    %v1492 = vpop.f32.mrb[0].mxu0
    %v1493 = vadd.f32 %v1349, %v1492
    %v1494 = vpop.f32.mrb[0].mxu0
    %v1495 = vadd.f32 %v1351, %v1494
    %1496 = vmatprep.mubr.f32.mxu0 0.0
    %v1497 = vand.u32 %v131, 4294901760
    %v1498 = vsub.f32 %v131, %v1497
    %1499 = vmatmul.mubr.f32.gmra.mrb[0].mxu0 %v1498
    %v1500 = vpop.f32.mrb[0].mxu0
    %v1501 = vadd.f32 %v1356, %v1500
    %v1502 = vpop.f32.mrb[0].mxu0
    %v1503 = vadd.f32 %v1358, %v1502
    %1504 = vdwg.mxu0
    %v1505 = vand.u32 %v29, 4294901760
    %1506 = vmatprep.subr.mxu0 %v1505
    %v1507 = vand.u32 %v28, 4294901760
    %1508 = vmatpush1.msra.mxu0 %v1507
    %v1509 = vand.u32 %v35, 4294901760
    %1510 = vmatprep.subr.mxu0 %v1509
    %v1511 = vand.u32 %v34, 4294901760
    %1512 = vmatpush1.msra.mxu0 %v1511
    %v1513 = vand.u32 %v41, 4294901760
    %1514 = vmatprep.subr.mxu0 %v1513
    %v1515 = vand.u32 %v40, 4294901760
    %1516 = vmatpush1.msra.mxu0 %v1515
    %v1517 = vand.u32 %v144, 4294901760
    %1518 = vmatprep.subr.mxu0 %v1517
    %v1519 = vand.u32 %v141, 4294901760
    %1520 = vmatpush1.msra.mxu0 %v1519
    %1521 = vmatprep.subr.mxu0 0.0
    %1522 = vmatpush1.msra.mxu0 0.0
    %1523 = vmatprep.subr.mxu0 0.0
    %1524 = vmatpush1.msra.mxu0 0.0
    %1525 = vmatprep.subr.mxu0 0.0
    %1526 = vmatpush1.msra.mxu0 0.0
    %1527 = vmatprep.subr.mxu0 0.0
    %1528 = vmatpush1.msra.mxu0 0.0
    %1529 = vmatprep.subr.mxu0 0.0
    %1530 = vmatpush1.msra.mxu0 0.0
    %1531 = vmatprep.subr.mxu0 0.0
    %1532 = vmatpush1.msra.mxu0 0.0
    %1533 = vmatprep.subr.mxu0 0.0
    %1534 = vmatpush1.msra.mxu0 0.0
    %1535 = vmatprep.subr.mxu0 0.0
    %1536 = vmatpush1.msra.mxu0 0.0
    %1537 = vmatprep.subr.mxu0 0.0
    %1538 = vmatpush1.msra.mxu0 0.0
    %1539 = vmatprep.subr.mxu0 0.0
    %1540 = vmatpush1.msra.mxu0 0.0
    %1541 = vmatprep.subr.mxu0 0.0
    %1542 = vmatpush1.msra.mxu0 0.0
    %1543 = vmatprep.subr.mxu0 0.0
    %1544 = vmatpush1.msra.mxu0 0.0
    %1545 = vmatprep.subr.mxu0 0.0
    %1546 = vmatpush1.msra.mxu0 0.0
    %1547 = vmatprep.subr.mxu0 0.0
    %1548 = vmatpush1.msra.mxu0 0.0
    %1549 = vmatprep.subr.mxu0 0.0
    %1550 = vmatpush1.msra.mxu0 0.0
    %1551 = vmatprep.subr.mxu0 0.0
    %1552 = vmatpush1.msra.mxu0 0.0
    %1553 = vmatprep.subr.mxu0 0.0
    %1554 = vmatpush1.msra.mxu0 0.0
    %1555 = vmatprep.subr.mxu0 0.0
    %1556 = vmatpush1.msra.mxu0 0.0
    %1557 = vmatprep.subr.mxu0 0.0
    %1558 = vmatpush1.msra.mxu0 0.0
    %1559 = vmatprep.subr.mxu0 0.0
    %1560 = vmatpush1.msra.mxu0 0.0
    %1561 = vmatprep.subr.mxu0 0.0
    %1562 = vmatpush1.msra.mxu0 0.0
    %1563 = vmatprep.subr.mxu0 0.0
    %1564 = vmatpush1.msra.mxu0 0.0
    %1565 = vmatprep.subr.mxu0 0.0
    %1566 = vmatpush1.msra.mxu0 0.0
    %1567 = vmatprep.subr.mxu0 0.0
    %1568 = vmatpush1.msra.mxu0 0.0
    %1569 = vmatprep.subr.mxu0 0.0
    %1570 = vmatpush1.msra.mxu0 0.0
    %1571 = vmatprep.subr.mxu0 0.0
    %1572 = vmatpush1.msra.mxu0 0.0
    %1573 = vmatprep.subr.mxu0 0.0
    %1574 = vmatpush1.msra.mxu0 0.0
    %1575 = vmatprep.subr.mxu0 0.0
    %1576 = vmatpush1.msra.mxu0 0.0
    %1577 = vmatprep.mubr.f32.mxu0 0.0
    %v1578 = vand.u32 %v110, 4294901760
    %v1579 = vsub.f32 %v110, %v1578
    %v1580 = vand.u32 %v1579, 4294901760
    %1581 = vmatmul.mubr.f32.gmra.mrb[0].mxu0 %v1580
    %v1582 = vpop.f32.mrb[0].mxu0
    %v1583 = vadd.f32 %v1445, %v1582
    %v1584 = vpop.f32.mrb[0].mxu0
    %v1585 = vadd.f32 %v1447, %v1584
    %1586 = vmatprep.mubr.f32.mxu0 0.0
    %v1587 = vand.u32 %v113, 4294901760
    %v1588 = vsub.f32 %v113, %v1587
    %v1589 = vand.u32 %v1588, 4294901760
    %1590 = vmatmul.mubr.f32.gmra.mrb[0].mxu0 %v1589
    %v1591 = vpop.f32.mrb[0].mxu0
    %v1592 = vadd.f32 %v1453, %v1591
    %v1593 = vpop.f32.mrb[0].mxu0
    %v1594 = vadd.f32 %v1455, %v1593
    %1595 = vmatprep.mubr.f32.mxu0 0.0
    %v1596 = vand.u32 %v116, 4294901760
    %v1597 = vsub.f32 %v116, %v1596
    %v1598 = vand.u32 %v1597, 4294901760
    %1599 = vmatmul.mubr.f32.gmra.mrb[0].mxu0 %v1598
    %v1600 = vpop.f32.mrb[0].mxu0
    %v1601 = vadd.f32 %v1461, %v1600
    %v1602 = vpop.f32.mrb[0].mxu0
    %v1603 = vadd.f32 %v1463, %v1602
    %1604 = vmatprep.mubr.f32.mxu0 0.0
    %v1605 = vand.u32 %v119, 4294901760
    %v1606 = vsub.f32 %v119, %v1605
    %v1607 = vand.u32 %v1606, 4294901760
    %1608 = vmatmul.mubr.f32.gmra.mrb[0].mxu0 %v1607
    %v1609 = vpop.f32.mrb[0].mxu0
    %v1610 = vadd.f32 %v1469, %v1609
    %v1611 = vpop.f32.mrb[0].mxu0
    %v1612 = vadd.f32 %v1471, %v1611
    %1613 = vmatprep.mubr.f32.mxu0 0.0
    %v1614 = vand.u32 %v122, 4294901760
    %v1615 = vsub.f32 %v122, %v1614
    %v1616 = vand.u32 %v1615, 4294901760
    %1617 = vmatmul.mubr.f32.gmra.mrb[0].mxu0 %v1616
    %v1618 = vpop.f32.mrb[0].mxu0
    %v1619 = vadd.f32 %v1477, %v1618
    %v1620 = vpop.f32.mrb[0].mxu0
    %v1621 = vadd.f32 %v1479, %v1620
    %1622 = vmatprep.mubr.f32.mxu0 0.0
    %v1623 = vand.u32 %v125, 4294901760
    %v1624 = vsub.f32 %v125, %v1623
    %v1625 = vand.u32 %v1624, 4294901760
    %1626 = vmatmul.mubr.f32.gmra.mrb[0].mxu0 %v1625
    %v1627 = vpop.f32.mrb[0].mxu0
    %v1628 = vadd.f32 %v1485, %v1627
    %v1629 = vpop.f32.mrb[0].mxu0
    %v1630 = vadd.f32 %v1487, %v1629
    %1631 = vmatprep.mubr.f32.mxu0 0.0
    %v1632 = vand.u32 %v128, 4294901760
    %v1633 = vsub.f32 %v128, %v1632
    %v1634 = vand.u32 %v1633, 4294901760
    %1635 = vmatmul.mubr.f32.gmra.mrb[0].mxu0 %v1634
    %v1636 = vpop.f32.mrb[0].mxu0
    %v1637 = vadd.f32 %v1493, %v1636
    %v1638 = vpop.f32.mrb[0].mxu0
    %v1639 = vadd.f32 %v1495, %v1638
    %1640 = vmatprep.mubr.f32.mxu0 0.0
    %v1641 = vand.u32 %v131, 4294901760
    %v1642 = vsub.f32 %v131, %v1641
    %v1643 = vand.u32 %v1642, 4294901760
    %1644 = vmatmul.mubr.f32.gmra.mrb[0].mxu0 %v1643
    %v1645 = vpop.f32.mrb[0].mxu0
    %v1646 = vadd.f32 %v1501, %v1645
    %v1647 = vpop.f32.mrb[0].mxu0
    %v1648 = vadd.f32 %v1503, %v1647
    %1649 = vdwg.mxu0
    %v1650 = vand.u32 %v29, 4294901760
    %v1651 = vsub.f32 %v29, %v1650
    %v1652 = vand.u32 %v1651, 4294901760
    %1653 = vmatprep.subr.mxu0 %v1652
    %v1654 = vand.u32 %v28, 4294901760
    %v1655 = vsub.f32 %v28, %v1654
    %v1656 = vand.u32 %v1655, 4294901760
    %1657 = vmatpush1.msra.mxu0 %v1656
    %v1658 = vand.u32 %v35, 4294901760
    %v1659 = vsub.f32 %v35, %v1658
    %v1660 = vand.u32 %v1659, 4294901760
    %1661 = vmatprep.subr.mxu0 %v1660
    %v1662 = vand.u32 %v34, 4294901760
    %v1663 = vsub.f32 %v34, %v1662
    %v1664 = vand.u32 %v1663, 4294901760
    %1665 = vmatpush1.msra.mxu0 %v1664
    %v1666 = vand.u32 %v41, 4294901760
    %v1667 = vsub.f32 %v41, %v1666
    %v1668 = vand.u32 %v1667, 4294901760
    %1669 = vmatprep.subr.mxu0 %v1668
    %v1670 = vand.u32 %v40, 4294901760
    %v1671 = vsub.f32 %v40, %v1670
    %v1672 = vand.u32 %v1671, 4294901760
    %1673 = vmatpush1.msra.mxu0 %v1672
    %v1674 = vand.u32 %v144, 4294901760
    %v1675 = vsub.f32 %v144, %v1674
    %v1676 = vand.u32 %v1675, 4294901760
    %1677 = vmatprep.subr.mxu0 %v1676
    %v1678 = vand.u32 %v141, 4294901760
    %v1679 = vsub.f32 %v141, %v1678
    %v1680 = vand.u32 %v1679, 4294901760
    %1681 = vmatpush1.msra.mxu0 %v1680
    %1682 = vmatprep.subr.mxu0 0.0
    %1683 = vmatpush1.msra.mxu0 0.0
    %1684 = vmatprep.subr.mxu0 0.0
    %1685 = vmatpush1.msra.mxu0 0.0
    %1686 = vmatprep.subr.mxu0 0.0
    %1687 = vmatpush1.msra.mxu0 0.0
    %1688 = vmatprep.subr.mxu0 0.0
    %1689 = vmatpush1.msra.mxu0 0.0
    %1690 = vmatprep.subr.mxu0 0.0
    %1691 = vmatpush1.msra.mxu0 0.0
    %1692 = vmatprep.subr.mxu0 0.0
    %1693 = vmatpush1.msra.mxu0 0.0
    %1694 = vmatprep.subr.mxu0 0.0
    %1695 = vmatpush1.msra.mxu0 0.0
    %1696 = vmatprep.subr.mxu0 0.0
    %1697 = vmatpush1.msra.mxu0 0.0
    %1698 = vmatprep.subr.mxu0 0.0
    %1699 = vmatpush1.msra.mxu0 0.0
    %1700 = vmatprep.subr.mxu0 0.0
    %1701 = vmatpush1.msra.mxu0 0.0
    %1702 = vmatprep.subr.mxu0 0.0
    %1703 = vmatpush1.msra.mxu0 0.0
    %1704 = vmatprep.subr.mxu0 0.0
    %1705 = vmatpush1.msra.mxu0 0.0
    %1706 = vmatprep.subr.mxu0 0.0
    %1707 = vmatpush1.msra.mxu0 0.0
    %1708 = vmatprep.subr.mxu0 0.0
    %1709 = vmatpush1.msra.mxu0 0.0
    %1710 = vmatprep.subr.mxu0 0.0
    %1711 = vmatpush1.msra.mxu0 0.0
    %1712 = vmatprep.subr.mxu0 0.0
    %1713 = vmatpush1.msra.mxu0 0.0
    %1714 = vmatprep.subr.mxu0 0.0
    %1715 = vmatpush1.msra.mxu0 0.0
    %1716 = vmatprep.subr.mxu0 0.0
    %1717 = vmatpush1.msra.mxu0 0.0
    %1718 = vmatprep.subr.mxu0 0.0
    %1719 = vmatpush1.msra.mxu0 0.0
    %1720 = vmatprep.subr.mxu0 0.0
    %1721 = vmatpush1.msra.mxu0 0.0
    %1722 = vmatprep.subr.mxu0 0.0
    %1723 = vmatpush1.msra.mxu0 0.0
    %1724 = vmatprep.subr.mxu0 0.0
    %1725 = vmatpush1.msra.mxu0 0.0
    %1726 = vmatprep.subr.mxu0 0.0
    %1727 = vmatpush1.msra.mxu0 0.0
    %1728 = vmatprep.subr.mxu0 0.0
    %1729 = vmatpush1.msra.mxu0 0.0
    %1730 = vmatprep.subr.mxu0 0.0
    %1731 = vmatpush1.msra.mxu0 0.0
    %1732 = vmatprep.subr.mxu0 0.0
    %1733 = vmatpush1.msra.mxu0 0.0
    %1734 = vmatprep.subr.mxu0 0.0
    %1735 = vmatpush1.msra.mxu0 0.0
    %1736 = vmatprep.subr.mxu0 0.0
    %1737 = vmatpush1.msra.mxu0 0.0
    %1738 = vmatprep.mubr.f32.mxu0 0.0
    %v1739 = vand.u32 %v110, 4294901760
    %1740 = vmatmul.mubr.f32.gmra.mrb[0].mxu0 %v1739
    %v1741 = vpop.f32.mrb[0].mxu0
    %v1742 = vadd.f32 %v1583, %v1741
    %v1743 = vpop.f32.mrb[0].mxu0
    %v1744 = vadd.f32 %v1585, %v1743
    %1745 = vmatprep.mubr.f32.mxu0 0.0
    %v1746 = vand.u32 %v113, 4294901760
    %1747 = vmatmul.mubr.f32.gmra.mrb[0].mxu0 %v1746
    %v1748 = vpop.f32.mrb[0].mxu0
    %v1749 = vadd.f32 %v1592, %v1748
    %v1750 = vpop.f32.mrb[0].mxu0
    %v1751 = vadd.f32 %v1594, %v1750
    %1752 = vmatprep.mubr.f32.mxu0 0.0
    %v1753 = vand.u32 %v116, 4294901760
    %1754 = vmatmul.mubr.f32.gmra.mrb[0].mxu0 %v1753
    %v1755 = vpop.f32.mrb[0].mxu0
    %v1756 = vadd.f32 %v1601, %v1755
    %v1757 = vpop.f32.mrb[0].mxu0
    %v1758 = vadd.f32 %v1603, %v1757
    %1759 = vmatprep.mubr.f32.mxu0 0.0
    %v1760 = vand.u32 %v119, 4294901760
    %1761 = vmatmul.mubr.f32.gmra.mrb[0].mxu0 %v1760
    %v1762 = vpop.f32.mrb[0].mxu0
    %v1763 = vadd.f32 %v1610, %v1762
    %v1764 = vpop.f32.mrb[0].mxu0
    %v1765 = vadd.f32 %v1612, %v1764
    %1766 = vmatprep.mubr.f32.mxu0 0.0
    %v1767 = vand.u32 %v122, 4294901760
    %1768 = vmatmul.mubr.f32.gmra.mrb[0].mxu0 %v1767
    %v1769 = vpop.f32.mrb[0].mxu0
    %v1770 = vadd.f32 %v1619, %v1769
    %v1771 = vpop.f32.mrb[0].mxu0
    %v1772 = vadd.f32 %v1621, %v1771
    %1773 = vmatprep.mubr.f32.mxu0 0.0
    %v1774 = vand.u32 %v125, 4294901760
    %1775 = vmatmul.mubr.f32.gmra.mrb[0].mxu0 %v1774
    %v1776 = vpop.f32.mrb[0].mxu0
    %v1777 = vadd.f32 %v1628, %v1776
    %v1778 = vpop.f32.mrb[0].mxu0
    %v1779 = vadd.f32 %v1630, %v1778
    %1780 = vmatprep.mubr.f32.mxu0 0.0
    %v1781 = vand.u32 %v128, 4294901760
    %1782 = vmatmul.mubr.f32.gmra.mrb[0].mxu0 %v1781
    %v1783 = vpop.f32.mrb[0].mxu0
    %v1784 = vadd.f32 %v1637, %v1783
    %v1785 = vpop.f32.mrb[0].mxu0
    %v1786 = vadd.f32 %v1639, %v1785
    %1787 = vmatprep.mubr.f32.mxu0 0.0
    %v1788 = vand.u32 %v131, 4294901760
    %1789 = vmatmul.mubr.f32.gmra.mrb[0].mxu0 %v1788
    %v1790 = vpop.f32.mrb[0].mxu0
    %v1791 = vadd.f32 %v1646, %v1790
    %v1792 = vpop.f32.mrb[0].mxu0
    %v1793 = vadd.f32 %v1648, %v1792
    %1794 = vdwg.mxu0
    %v1795 = vand.u32 %v29, 4294901760
    %1796 = vmatprep.subr.mxu0 %v1795
    %v1797 = vand.u32 %v28, 4294901760
    %1798 = vmatpush1.msra.mxu0 %v1797
    %v1799 = vand.u32 %v35, 4294901760
    %1800 = vmatprep.subr.mxu0 %v1799
    %v1801 = vand.u32 %v34, 4294901760
    %1802 = vmatpush1.msra.mxu0 %v1801
    %v1803 = vand.u32 %v41, 4294901760
    %1804 = vmatprep.subr.mxu0 %v1803
    %v1805 = vand.u32 %v40, 4294901760
    %1806 = vmatpush1.msra.mxu0 %v1805
    %v1807 = vand.u32 %v144, 4294901760
    %1808 = vmatprep.subr.mxu0 %v1807
    %v1809 = vand.u32 %v141, 4294901760
    %1810 = vmatpush1.msra.mxu0 %v1809
    %1811 = vmatprep.subr.mxu0 0.0
    %1812 = vmatpush1.msra.mxu0 0.0
    %1813 = vmatprep.subr.mxu0 0.0
    %1814 = vmatpush1.msra.mxu0 0.0
    %1815 = vmatprep.subr.mxu0 0.0
    %1816 = vmatpush1.msra.mxu0 0.0
    %1817 = vmatprep.subr.mxu0 0.0
    %1818 = vmatpush1.msra.mxu0 0.0
    %1819 = vmatprep.subr.mxu0 0.0
    %1820 = vmatpush1.msra.mxu0 0.0
    %1821 = vmatprep.subr.mxu0 0.0
    %1822 = vmatpush1.msra.mxu0 0.0
    %1823 = vmatprep.subr.mxu0 0.0
    %1824 = vmatpush1.msra.mxu0 0.0
    %1825 = vmatprep.subr.mxu0 0.0
    %1826 = vmatpush1.msra.mxu0 0.0
    %1827 = vmatprep.subr.mxu0 0.0
    %1828 = vmatpush1.msra.mxu0 0.0
    %1829 = vmatprep.subr.mxu0 0.0
    %1830 = vmatpush1.msra.mxu0 0.0
    %1831 = vmatprep.subr.mxu0 0.0
    %1832 = vmatpush1.msra.mxu0 0.0
    %1833 = vmatprep.subr.mxu0 0.0
    %1834 = vmatpush1.msra.mxu0 0.0
    %1835 = vmatprep.subr.mxu0 0.0
    %1836 = vmatpush1.msra.mxu0 0.0
    %1837 = vmatprep.subr.mxu0 0.0
    %1838 = vmatpush1.msra.mxu0 0.0
    %1839 = vmatprep.subr.mxu0 0.0
    %1840 = vmatpush1.msra.mxu0 0.0
    %1841 = vmatprep.subr.mxu0 0.0
    %1842 = vmatpush1.msra.mxu0 0.0
    %1843 = vmatprep.subr.mxu0 0.0
    %1844 = vmatpush1.msra.mxu0 0.0
    %1845 = vmatprep.subr.mxu0 0.0
    %1846 = vmatpush1.msra.mxu0 0.0
    %1847 = vmatprep.subr.mxu0 0.0
    %1848 = vmatpush1.msra.mxu0 0.0
    %1849 = vmatprep.subr.mxu0 0.0
    %1850 = vmatpush1.msra.mxu0 0.0
    %1851 = vmatprep.subr.mxu0 0.0
    %1852 = vmatpush1.msra.mxu0 0.0
    %1853 = vmatprep.subr.mxu0 0.0
    %1854 = vmatpush1.msra.mxu0 0.0
    %1855 = vmatprep.subr.mxu0 0.0
    %1856 = vmatpush1.msra.mxu0 0.0
    %1857 = vmatprep.subr.mxu0 0.0
    %1858 = vmatpush1.msra.mxu0 0.0
    %1859 = vmatprep.subr.mxu0 0.0
    %1860 = vmatpush1.msra.mxu0 0.0
    %1861 = vmatprep.subr.mxu0 0.0
    %1862 = vmatpush1.msra.mxu0 0.0
    %1863 = vmatprep.subr.mxu0 0.0
    %1864 = vmatpush1.msra.mxu0 0.0
    %1865 = vmatprep.subr.mxu0 0.0
    %1866 = vmatpush1.msra.mxu0 0.0
    %1867 = vmatprep.mubr.f32.mxu0 0.0
    %v1868 = vand.u32 %v110, 4294901760
    %1869 = vmatmul.mubr.f32.gmra.mrb[0].mxu0 %v1868
    %v1870 = vpop.f32.mrb[0].mxu0
    %v1871 = vadd.f32 %v1742, %v1870
    %v1872 = vpop.f32.mrb[0].mxu0
    %v1873 = vadd.f32 %v1744, %v1872
    %1874 = vmatprep.mubr.f32.mxu0 0.0
    %v1875 = vand.u32 %v113, 4294901760
    %1876 = vmatmul.mubr.f32.gmra.mrb[0].mxu0 %v1875
    %v1877 = vpop.f32.mrb[0].mxu0
    %v1878 = vadd.f32 %v1749, %v1877
    %v1879 = vpop.f32.mrb[0].mxu0
    %v1880 = vadd.f32 %v1751, %v1879
    %1881 = vmatprep.mubr.f32.mxu0 0.0
    %v1882 = vand.u32 %v116, 4294901760
    %1883 = vmatmul.mubr.f32.gmra.mrb[0].mxu0 %v1882
    %v1884 = vpop.f32.mrb[0].mxu0
    %v1885 = vadd.f32 %v1756, %v1884
    %v1886 = vpop.f32.mrb[0].mxu0
    %v1887 = vadd.f32 %v1758, %v1886
    %1888 = vmatprep.mubr.f32.mxu0 0.0
    %v1889 = vand.u32 %v119, 4294901760
    %1890 = vmatmul.mubr.f32.gmra.mrb[0].mxu0 %v1889
    %v1891 = vpop.f32.mrb[0].mxu0
    %v1892 = vadd.f32 %v1763, %v1891
    %v1893 = vpop.f32.mrb[0].mxu0
    %v1894 = vadd.f32 %v1765, %v1893
    %1895 = vmatprep.mubr.f32.mxu0 0.0
    %v1896 = vand.u32 %v122, 4294901760
    %1897 = vmatmul.mubr.f32.gmra.mrb[0].mxu0 %v1896
    %v1898 = vpop.f32.mrb[0].mxu0
    %v1899 = vadd.f32 %v1770, %v1898
    %v1900 = vpop.f32.mrb[0].mxu0
    %v1901 = vadd.f32 %v1772, %v1900
    %1902 = vmatprep.mubr.f32.mxu0 0.0
    %v1903 = vand.u32 %v125, 4294901760
    %1904 = vmatmul.mubr.f32.gmra.mrb[0].mxu0 %v1903
    %v1905 = vpop.f32.mrb[0].mxu0
    %v1906 = vadd.f32 %v1777, %v1905
    %v1907 = vpop.f32.mrb[0].mxu0
    %v1908 = vadd.f32 %v1779, %v1907
    %1909 = vmatprep.mubr.f32.mxu0 0.0
    %v1910 = vand.u32 %v128, 4294901760
    %1911 = vmatmul.mubr.f32.gmra.mrb[0].mxu0 %v1910
    %v1912 = vpop.f32.mrb[0].mxu0
    %v1913 = vadd.f32 %v1784, %v1912
    %v1914 = vpop.f32.mrb[0].mxu0
    %v1915 = vadd.f32 %v1786, %v1914
    %1916 = vmatprep.mubr.f32.mxu0 0.0
    %v1917 = vand.u32 %v131, 4294901760
    %1918 = vmatmul.mubr.f32.gmra.mrb[0].mxu0 %v1917
    %v1919 = vpop.f32.mrb[0].mxu0
    %v1920 = vadd.f32 %v1791, %v1919
    %v1921 = vpop.f32.mrb[0].mxu0
    %v1922 = vadd.f32 %v1793, %v1921
    %1923 = vdwg.mxu0
    %v1924 = vand.u32 %v31, 4294901760
    %1925 = vmatprep.subr.mxu0 %v1924
    %v1926 = vand.u32 %v30, 4294901760
    %1927 = vmatpush1.msra.mxu0 %v1926
    %v1928 = vand.u32 %v37, 4294901760
    %1929 = vmatprep.subr.mxu0 %v1928
    %v1930 = vand.u32 %v36, 4294901760
    %1931 = vmatpush1.msra.mxu0 %v1930
    %v1932 = vand.u32 %v43, 4294901760
    %1933 = vmatprep.subr.mxu0 %v1932
    %v1934 = vand.u32 %v42, 4294901760
    %1935 = vmatpush1.msra.mxu0 %v1934
    %v1936 = vand.u32 %v150, 4294901760
    %1937 = vmatprep.subr.mxu0 %v1936
    %v1938 = vand.u32 %v147, 4294901760
    %1939 = vmatpush1.msra.mxu0 %v1938
    %1940 = vmatprep.subr.mxu0 0.0
    %1941 = vmatpush1.msra.mxu0 0.0
    %1942 = vmatprep.subr.mxu0 0.0
    %1943 = vmatpush1.msra.mxu0 0.0
    %1944 = vmatprep.subr.mxu0 0.0
    %1945 = vmatpush1.msra.mxu0 0.0
    %1946 = vmatprep.subr.mxu0 0.0
    %1947 = vmatpush1.msra.mxu0 0.0
    %1948 = vmatprep.subr.mxu0 0.0
    %1949 = vmatpush1.msra.mxu0 0.0
    %1950 = vmatprep.subr.mxu0 0.0
    %1951 = vmatpush1.msra.mxu0 0.0
    %1952 = vmatprep.subr.mxu0 0.0
    %1953 = vmatpush1.msra.mxu0 0.0
    %1954 = vmatprep.subr.mxu0 0.0
    %1955 = vmatpush1.msra.mxu0 0.0
    %1956 = vmatprep.subr.mxu0 0.0
    %1957 = vmatpush1.msra.mxu0 0.0
    %1958 = vmatprep.subr.mxu0 0.0
    %1959 = vmatpush1.msra.mxu0 0.0
    %1960 = vmatprep.subr.mxu0 0.0
    %1961 = vmatpush1.msra.mxu0 0.0
    %1962 = vmatprep.subr.mxu0 0.0
    %1963 = vmatpush1.msra.mxu0 0.0
    %1964 = vmatprep.subr.mxu0 0.0
    %1965 = vmatpush1.msra.mxu0 0.0
    %1966 = vmatprep.subr.mxu0 0.0
    %1967 = vmatpush1.msra.mxu0 0.0
    %1968 = vmatprep.subr.mxu0 0.0
    %1969 = vmatpush1.msra.mxu0 0.0
    %1970 = vmatprep.subr.mxu0 0.0
    %1971 = vmatpush1.msra.mxu0 0.0
    %1972 = vmatprep.subr.mxu0 0.0
    %1973 = vmatpush1.msra.mxu0 0.0
    %1974 = vmatprep.subr.mxu0 0.0
    %1975 = vmatpush1.msra.mxu0 0.0
    %1976 = vmatprep.subr.mxu0 0.0
    %1977 = vmatpush1.msra.mxu0 0.0
    %1978 = vmatprep.subr.mxu0 0.0
    %1979 = vmatpush1.msra.mxu0 0.0
    %1980 = vmatprep.subr.mxu0 0.0
    %1981 = vmatpush1.msra.mxu0 0.0
    %1982 = vmatprep.subr.mxu0 0.0
    %1983 = vmatpush1.msra.mxu0 0.0
    %1984 = vmatprep.subr.mxu0 0.0
    %1985 = vmatpush1.msra.mxu0 0.0
    %1986 = vmatprep.subr.mxu0 0.0
    %1987 = vmatpush1.msra.mxu0 0.0
    %1988 = vmatprep.subr.mxu0 0.0
    %1989 = vmatpush1.msra.mxu0 0.0
    %1990 = vmatprep.subr.mxu0 0.0
    %1991 = vmatpush1.msra.mxu0 0.0
    %1992 = vmatprep.subr.mxu0 0.0
    %1993 = vmatpush1.msra.mxu0 0.0
    %1994 = vmatprep.subr.mxu0 0.0
    %1995 = vmatpush1.msra.mxu0 0.0
    %1996 = vmatprep.mubr.f32.mxu0 0.0
    %v1997 = vand.u32 %v110, 4294901760
    %v1998 = vsub.f32 %v110, %v1997
    %v1999 = vand.u32 %v1998, 4294901760
    %v2000 = vsub.f32 %v1998, %v1999
    %v2001 = vand.u32 %v2000, 4294901760
    %2002 = vmatmul.mubr.f32.gmra.mrb[0].mxu0 %v2001
    %v2003 = vpop.f32.mrb[0].mxu0
    %v2004 = vadd.f32 0.0, %v2003
    %v2005 = vpop.f32.mrb[0].mxu0
    %v2006 = vadd.f32 0.0, %v2005
    %2007 = vmatprep.mubr.f32.mxu0 0.0
    %v2008 = vand.u32 %v113, 4294901760
    %v2009 = vsub.f32 %v113, %v2008
    %v2010 = vand.u32 %v2009, 4294901760
    %v2011 = vsub.f32 %v2009, %v2010
    %v2012 = vand.u32 %v2011, 4294901760
    %2013 = vmatmul.mubr.f32.gmra.mrb[0].mxu0 %v2012
    %v2014 = vpop.f32.mrb[0].mxu0
    %v2015 = vadd.f32 0.0, %v2014
    %v2016 = vpop.f32.mrb[0].mxu0
    %v2017 = vadd.f32 0.0, %v2016
    %2018 = vmatprep.mubr.f32.mxu0 0.0
    %v2019 = vand.u32 %v116, 4294901760
    %v2020 = vsub.f32 %v116, %v2019
    %v2021 = vand.u32 %v2020, 4294901760
    %v2022 = vsub.f32 %v2020, %v2021
    %v2023 = vand.u32 %v2022, 4294901760
    %2024 = vmatmul.mubr.f32.gmra.mrb[0].mxu0 %v2023
    %v2025 = vpop.f32.mrb[0].mxu0
    %v2026 = vadd.f32 0.0, %v2025
    %v2027 = vpop.f32.mrb[0].mxu0
    %v2028 = vadd.f32 0.0, %v2027
    %2029 = vmatprep.mubr.f32.mxu0 0.0
    %v2030 = vand.u32 %v119, 4294901760
    %v2031 = vsub.f32 %v119, %v2030
    %v2032 = vand.u32 %v2031, 4294901760
    %v2033 = vsub.f32 %v2031, %v2032
    %v2034 = vand.u32 %v2033, 4294901760
    %2035 = vmatmul.mubr.f32.gmra.mrb[0].mxu0 %v2034
    %v2036 = vpop.f32.mrb[0].mxu0
    %v2037 = vadd.f32 0.0, %v2036
    %v2038 = vpop.f32.mrb[0].mxu0
    %v2039 = vadd.f32 0.0, %v2038
    %2040 = vmatprep.mubr.f32.mxu0 0.0
    %v2041 = vand.u32 %v122, 4294901760
    %v2042 = vsub.f32 %v122, %v2041
    %v2043 = vand.u32 %v2042, 4294901760
    %v2044 = vsub.f32 %v2042, %v2043
    %v2045 = vand.u32 %v2044, 4294901760
    %2046 = vmatmul.mubr.f32.gmra.mrb[0].mxu0 %v2045
    %v2047 = vpop.f32.mrb[0].mxu0
    %v2048 = vadd.f32 0.0, %v2047
    %v2049 = vpop.f32.mrb[0].mxu0
    %v2050 = vadd.f32 0.0, %v2049
    %2051 = vmatprep.mubr.f32.mxu0 0.0
    %v2052 = vand.u32 %v125, 4294901760
    %v2053 = vsub.f32 %v125, %v2052
    %v2054 = vand.u32 %v2053, 4294901760
    %v2055 = vsub.f32 %v2053, %v2054
    %v2056 = vand.u32 %v2055, 4294901760
    %2057 = vmatmul.mubr.f32.gmra.mrb[0].mxu0 %v2056
    %v2058 = vpop.f32.mrb[0].mxu0
    %v2059 = vadd.f32 0.0, %v2058
    %v2060 = vpop.f32.mrb[0].mxu0
    %v2061 = vadd.f32 0.0, %v2060
    %2062 = vmatprep.mubr.f32.mxu0 0.0
    %v2063 = vand.u32 %v128, 4294901760
    %v2064 = vsub.f32 %v128, %v2063
    %v2065 = vand.u32 %v2064, 4294901760
    %v2066 = vsub.f32 %v2064, %v2065
    %v2067 = vand.u32 %v2066, 4294901760
    %2068 = vmatmul.mubr.f32.gmra.mrb[0].mxu0 %v2067
    %v2069 = vpop.f32.mrb[0].mxu0
    %v2070 = vadd.f32 0.0, %v2069
    %v2071 = vpop.f32.mrb[0].mxu0
    %v2072 = vadd.f32 0.0, %v2071
    %2073 = vmatprep.mubr.f32.mxu0 0.0
    %v2074 = vand.u32 %v131, 4294901760
    %v2075 = vsub.f32 %v131, %v2074
    %v2076 = vand.u32 %v2075, 4294901760
    %v2077 = vsub.f32 %v2075, %v2076
    %v2078 = vand.u32 %v2077, 4294901760
    %2079 = vmatmul.mubr.f32.gmra.mrb[0].mxu0 %v2078
    %v2080 = vpop.f32.mrb[0].mxu0
    %v2081 = vadd.f32 0.0, %v2080
    %v2082 = vpop.f32.mrb[0].mxu0
    %v2083 = vadd.f32 0.0, %v2082
    %2084 = vdwg.mxu0
    %v2085 = vand.u32 %v31, 4294901760
    %v2086 = vsub.f32 %v31, %v2085
    %v2087 = vand.u32 %v2086, 4294901760
    %v2088 = vsub.f32 %v2086, %v2087
    %v2089 = vand.u32 %v2088, 4294901760
    %2090 = vmatprep.subr.mxu0 %v2089
    %v2091 = vand.u32 %v30, 4294901760
    %v2092 = vsub.f32 %v30, %v2091
    %v2093 = vand.u32 %v2092, 4294901760
    %v2094 = vsub.f32 %v2092, %v2093
    %v2095 = vand.u32 %v2094, 4294901760
    %2096 = vmatpush1.msra.mxu0 %v2095
    %v2097 = vand.u32 %v37, 4294901760
    %v2098 = vsub.f32 %v37, %v2097
    %v2099 = vand.u32 %v2098, 4294901760
    %v2100 = vsub.f32 %v2098, %v2099
    %v2101 = vand.u32 %v2100, 4294901760
    %2102 = vmatprep.subr.mxu0 %v2101
    %v2103 = vand.u32 %v36, 4294901760
    %v2104 = vsub.f32 %v36, %v2103
    %v2105 = vand.u32 %v2104, 4294901760
    %v2106 = vsub.f32 %v2104, %v2105
    %v2107 = vand.u32 %v2106, 4294901760
    %2108 = vmatpush1.msra.mxu0 %v2107
    %v2109 = vand.u32 %v43, 4294901760
    %v2110 = vsub.f32 %v43, %v2109
    %v2111 = vand.u32 %v2110, 4294901760
    %v2112 = vsub.f32 %v2110, %v2111
    %v2113 = vand.u32 %v2112, 4294901760
    %2114 = vmatprep.subr.mxu0 %v2113
    %v2115 = vand.u32 %v42, 4294901760
    %v2116 = vsub.f32 %v42, %v2115
    %v2117 = vand.u32 %v2116, 4294901760
    %v2118 = vsub.f32 %v2116, %v2117
    %v2119 = vand.u32 %v2118, 4294901760
    %2120 = vmatpush1.msra.mxu0 %v2119
    %v2121 = vand.u32 %v150, 4294901760
    %v2122 = vsub.f32 %v150, %v2121
    %v2123 = vand.u32 %v2122, 4294901760
    %v2124 = vsub.f32 %v2122, %v2123
    %v2125 = vand.u32 %v2124, 4294901760
    %2126 = vmatprep.subr.mxu0 %v2125
    %v2127 = vand.u32 %v147, 4294901760
    %v2128 = vsub.f32 %v147, %v2127
    %v2129 = vand.u32 %v2128, 4294901760
    %v2130 = vsub.f32 %v2128, %v2129
    %v2131 = vand.u32 %v2130, 4294901760
    %2132 = vmatpush1.msra.mxu0 %v2131
    %2133 = vmatprep.subr.mxu0 0.0
    %2134 = vmatpush1.msra.mxu0 0.0
    %2135 = vmatprep.subr.mxu0 0.0
    %2136 = vmatpush1.msra.mxu0 0.0
    %2137 = vmatprep.subr.mxu0 0.0
    %2138 = vmatpush1.msra.mxu0 0.0
    %2139 = vmatprep.subr.mxu0 0.0
    %2140 = vmatpush1.msra.mxu0 0.0
    %2141 = vmatprep.subr.mxu0 0.0
    %2142 = vmatpush1.msra.mxu0 0.0
    %2143 = vmatprep.subr.mxu0 0.0
    %2144 = vmatpush1.msra.mxu0 0.0
    %2145 = vmatprep.subr.mxu0 0.0
    %2146 = vmatpush1.msra.mxu0 0.0
    %2147 = vmatprep.subr.mxu0 0.0
    %2148 = vmatpush1.msra.mxu0 0.0
    %2149 = vmatprep.subr.mxu0 0.0
    %2150 = vmatpush1.msra.mxu0 0.0
    %2151 = vmatprep.subr.mxu0 0.0
    %2152 = vmatpush1.msra.mxu0 0.0
    %2153 = vmatprep.subr.mxu0 0.0
    %2154 = vmatpush1.msra.mxu0 0.0
    %2155 = vmatprep.subr.mxu0 0.0
    %2156 = vmatpush1.msra.mxu0 0.0
    %2157 = vmatprep.subr.mxu0 0.0
    %2158 = vmatpush1.msra.mxu0 0.0
    %2159 = vmatprep.subr.mxu0 0.0
    %2160 = vmatpush1.msra.mxu0 0.0
    %2161 = vmatprep.subr.mxu0 0.0
    %2162 = vmatpush1.msra.mxu0 0.0
    %2163 = vmatprep.subr.mxu0 0.0
    %2164 = vmatpush1.msra.mxu0 0.0
    %2165 = vmatprep.subr.mxu0 0.0
    %2166 = vmatpush1.msra.mxu0 0.0
    %2167 = vmatprep.subr.mxu0 0.0
    %2168 = vmatpush1.msra.mxu0 0.0
    %2169 = vmatprep.subr.mxu0 0.0
    %2170 = vmatpush1.msra.mxu0 0.0
    %2171 = vmatprep.subr.mxu0 0.0
    %2172 = vmatpush1.msra.mxu0 0.0
    %2173 = vmatprep.subr.mxu0 0.0
    %2174 = vmatpush1.msra.mxu0 0.0
    %2175 = vmatprep.subr.mxu0 0.0
    %2176 = vmatpush1.msra.mxu0 0.0
    %2177 = vmatprep.subr.mxu0 0.0
    %2178 = vmatpush1.msra.mxu0 0.0
    %2179 = vmatprep.subr.mxu0 0.0
    %2180 = vmatpush1.msra.mxu0 0.0
    %2181 = vmatprep.subr.mxu0 0.0
    %2182 = vmatpush1.msra.mxu0 0.0
    %2183 = vmatprep.subr.mxu0 0.0
    %2184 = vmatpush1.msra.mxu0 0.0
    %2185 = vmatprep.subr.mxu0 0.0
    %2186 = vmatpush1.msra.mxu0 0.0
    %2187 = vmatprep.subr.mxu0 0.0
    %2188 = vmatpush1.msra.mxu0 0.0
    %2189 = vmatprep.mubr.f32.mxu0 0.0
    %v2190 = vand.u32 %v110, 4294901760
    %2191 = vmatmul.mubr.f32.gmra.mrb[0].mxu0 %v2190
    %v2192 = vpop.f32.mrb[0].mxu0
    %v2193 = vadd.f32 %v2004, %v2192
    %v2194 = vpop.f32.mrb[0].mxu0
    %v2195 = vadd.f32 %v2006, %v2194
    %2196 = vmatprep.mubr.f32.mxu0 0.0
    %v2197 = vand.u32 %v113, 4294901760
    %2198 = vmatmul.mubr.f32.gmra.mrb[0].mxu0 %v2197
    %v2199 = vpop.f32.mrb[0].mxu0
    %v2200 = vadd.f32 %v2015, %v2199
    %v2201 = vpop.f32.mrb[0].mxu0
    %v2202 = vadd.f32 %v2017, %v2201
    %2203 = vmatprep.mubr.f32.mxu0 0.0
    %v2204 = vand.u32 %v116, 4294901760
    %2205 = vmatmul.mubr.f32.gmra.mrb[0].mxu0 %v2204
    %v2206 = vpop.f32.mrb[0].mxu0
    %v2207 = vadd.f32 %v2026, %v2206
    %v2208 = vpop.f32.mrb[0].mxu0
    %v2209 = vadd.f32 %v2028, %v2208
    %2210 = vmatprep.mubr.f32.mxu0 0.0
    %v2211 = vand.u32 %v119, 4294901760
    %2212 = vmatmul.mubr.f32.gmra.mrb[0].mxu0 %v2211
    %v2213 = vpop.f32.mrb[0].mxu0
    %v2214 = vadd.f32 %v2037, %v2213
    %v2215 = vpop.f32.mrb[0].mxu0
    %v2216 = vadd.f32 %v2039, %v2215
    %2217 = vmatprep.mubr.f32.mxu0 0.0
    %v2218 = vand.u32 %v122, 4294901760
    %2219 = vmatmul.mubr.f32.gmra.mrb[0].mxu0 %v2218
    %v2220 = vpop.f32.mrb[0].mxu0
    %v2221 = vadd.f32 %v2048, %v2220
    %v2222 = vpop.f32.mrb[0].mxu0
    %v2223 = vadd.f32 %v2050, %v2222
    %2224 = vmatprep.mubr.f32.mxu0 0.0
    %v2225 = vand.u32 %v125, 4294901760
    %2226 = vmatmul.mubr.f32.gmra.mrb[0].mxu0 %v2225
    %v2227 = vpop.f32.mrb[0].mxu0
    %v2228 = vadd.f32 %v2059, %v2227
    %v2229 = vpop.f32.mrb[0].mxu0
    %v2230 = vadd.f32 %v2061, %v2229
    %2231 = vmatprep.mubr.f32.mxu0 0.0
    %v2232 = vand.u32 %v128, 4294901760
    %2233 = vmatmul.mubr.f32.gmra.mrb[0].mxu0 %v2232
    %v2234 = vpop.f32.mrb[0].mxu0
    %v2235 = vadd.f32 %v2070, %v2234
    %v2236 = vpop.f32.mrb[0].mxu0
    %v2237 = vadd.f32 %v2072, %v2236
    %2238 = vmatprep.mubr.f32.mxu0 0.0
    %v2239 = vand.u32 %v131, 4294901760
    %2240 = vmatmul.mubr.f32.gmra.mrb[0].mxu0 %v2239
    %v2241 = vpop.f32.mrb[0].mxu0
    %v2242 = vadd.f32 %v2081, %v2241
    %v2243 = vpop.f32.mrb[0].mxu0
    %v2244 = vadd.f32 %v2083, %v2243
    %2245 = vdwg.mxu0
    %v2246 = vand.u32 %v31, 4294901760
    %v2247 = vsub.f32 %v31, %v2246
    %2248 = vmatprep.subr.mxu0 %v2247
    %v2249 = vand.u32 %v30, 4294901760
    %v2250 = vsub.f32 %v30, %v2249
    %2251 = vmatpush1.msra.mxu0 %v2250
    %v2252 = vand.u32 %v37, 4294901760
    %v2253 = vsub.f32 %v37, %v2252
    %2254 = vmatprep.subr.mxu0 %v2253
    %v2255 = vand.u32 %v36, 4294901760
    %v2256 = vsub.f32 %v36, %v2255
    %2257 = vmatpush1.msra.mxu0 %v2256
    %v2258 = vand.u32 %v43, 4294901760
    %v2259 = vsub.f32 %v43, %v2258
    %2260 = vmatprep.subr.mxu0 %v2259
    %v2261 = vand.u32 %v42, 4294901760
    %v2262 = vsub.f32 %v42, %v2261
    %2263 = vmatpush1.msra.mxu0 %v2262
    %v2264 = vand.u32 %v150, 4294901760
    %v2265 = vsub.f32 %v150, %v2264
    %2266 = vmatprep.subr.mxu0 %v2265
    %v2267 = vand.u32 %v147, 4294901760
    %v2268 = vsub.f32 %v147, %v2267
    %2269 = vmatpush1.msra.mxu0 %v2268
    %2270 = vmatprep.subr.mxu0 0.0
    %2271 = vmatpush1.msra.mxu0 0.0
    %2272 = vmatprep.subr.mxu0 0.0
    %2273 = vmatpush1.msra.mxu0 0.0
    %2274 = vmatprep.subr.mxu0 0.0
    %2275 = vmatpush1.msra.mxu0 0.0
    %2276 = vmatprep.subr.mxu0 0.0
    %2277 = vmatpush1.msra.mxu0 0.0
    %2278 = vmatprep.subr.mxu0 0.0
    %2279 = vmatpush1.msra.mxu0 0.0
    %2280 = vmatprep.subr.mxu0 0.0
    %2281 = vmatpush1.msra.mxu0 0.0
    %2282 = vmatprep.subr.mxu0 0.0
    %2283 = vmatpush1.msra.mxu0 0.0
    %2284 = vmatprep.subr.mxu0 0.0
    %2285 = vmatpush1.msra.mxu0 0.0
    %2286 = vmatprep.subr.mxu0 0.0
    %2287 = vmatpush1.msra.mxu0 0.0
    %2288 = vmatprep.subr.mxu0 0.0
    %2289 = vmatpush1.msra.mxu0 0.0
    %2290 = vmatprep.subr.mxu0 0.0
    %2291 = vmatpush1.msra.mxu0 0.0
    %2292 = vmatprep.subr.mxu0 0.0
    %2293 = vmatpush1.msra.mxu0 0.0
    %2294 = vmatprep.subr.mxu0 0.0
    %2295 = vmatpush1.msra.mxu0 0.0
    %2296 = vmatprep.subr.mxu0 0.0
    %2297 = vmatpush1.msra.mxu0 0.0
    %2298 = vmatprep.subr.mxu0 0.0
    %2299 = vmatpush1.msra.mxu0 0.0
    %2300 = vmatprep.subr.mxu0 0.0
    %2301 = vmatpush1.msra.mxu0 0.0
    %2302 = vmatprep.subr.mxu0 0.0
    %2303 = vmatpush1.msra.mxu0 0.0
    %2304 = vmatprep.subr.mxu0 0.0
    %2305 = vmatpush1.msra.mxu0 0.0
    %2306 = vmatprep.subr.mxu0 0.0
    %2307 = vmatpush1.msra.mxu0 0.0
    %2308 = vmatprep.subr.mxu0 0.0
    %2309 = vmatpush1.msra.mxu0 0.0
    %2310 = vmatprep.subr.mxu0 0.0
    %2311 = vmatpush1.msra.mxu0 0.0
    %2312 = vmatprep.subr.mxu0 0.0
    %2313 = vmatpush1.msra.mxu0 0.0
    %2314 = vmatprep.subr.mxu0 0.0
    %2315 = vmatpush1.msra.mxu0 0.0
    %2316 = vmatprep.subr.mxu0 0.0
    %2317 = vmatpush1.msra.mxu0 0.0
    %2318 = vmatprep.subr.mxu0 0.0
    %2319 = vmatpush1.msra.mxu0 0.0
    %2320 = vmatprep.subr.mxu0 0.0
    %2321 = vmatpush1.msra.mxu0 0.0
    %2322 = vmatprep.subr.mxu0 0.0
    %2323 = vmatpush1.msra.mxu0 0.0
    %2324 = vmatprep.subr.mxu0 0.0
    %2325 = vmatpush1.msra.mxu0 0.0
    %2326 = vmatprep.mubr.f32.mxu0 0.0
    %v2327 = vand.u32 %v110, 4294901760
    %v2328 = vsub.f32 %v110, %v2327
    %2329 = vmatmul.mubr.f32.gmra.mrb[0].mxu0 %v2328
    %v2330 = vpop.f32.mrb[0].mxu0
    %v2331 = vadd.f32 %v2193, %v2330
    %v2332 = vpop.f32.mrb[0].mxu0
    %v2333 = vadd.f32 %v2195, %v2332
    %2334 = vmatprep.mubr.f32.mxu0 0.0
    %v2335 = vand.u32 %v113, 4294901760
    %v2336 = vsub.f32 %v113, %v2335
    %2337 = vmatmul.mubr.f32.gmra.mrb[0].mxu0 %v2336
    %v2338 = vpop.f32.mrb[0].mxu0
    %v2339 = vadd.f32 %v2200, %v2338
    %v2340 = vpop.f32.mrb[0].mxu0
    %v2341 = vadd.f32 %v2202, %v2340
    %2342 = vmatprep.mubr.f32.mxu0 0.0
    %v2343 = vand.u32 %v116, 4294901760
    %v2344 = vsub.f32 %v116, %v2343
    %2345 = vmatmul.mubr.f32.gmra.mrb[0].mxu0 %v2344
    %v2346 = vpop.f32.mrb[0].mxu0
    %v2347 = vadd.f32 %v2207, %v2346
    %v2348 = vpop.f32.mrb[0].mxu0
    %v2349 = vadd.f32 %v2209, %v2348
    %2350 = vmatprep.mubr.f32.mxu0 0.0
    %v2351 = vand.u32 %v119, 4294901760
    %v2352 = vsub.f32 %v119, %v2351
    %2353 = vmatmul.mubr.f32.gmra.mrb[0].mxu0 %v2352
    %v2354 = vpop.f32.mrb[0].mxu0
    %v2355 = vadd.f32 %v2214, %v2354
    %v2356 = vpop.f32.mrb[0].mxu0
    %v2357 = vadd.f32 %v2216, %v2356
    %2358 = vmatprep.mubr.f32.mxu0 0.0
    %v2359 = vand.u32 %v122, 4294901760
    %v2360 = vsub.f32 %v122, %v2359
    %2361 = vmatmul.mubr.f32.gmra.mrb[0].mxu0 %v2360
    %v2362 = vpop.f32.mrb[0].mxu0
    %v2363 = vadd.f32 %v2221, %v2362
    %v2364 = vpop.f32.mrb[0].mxu0
    %v2365 = vadd.f32 %v2223, %v2364
    %2366 = vmatprep.mubr.f32.mxu0 0.0
    %v2367 = vand.u32 %v125, 4294901760
    %v2368 = vsub.f32 %v125, %v2367
    %2369 = vmatmul.mubr.f32.gmra.mrb[0].mxu0 %v2368
    %v2370 = vpop.f32.mrb[0].mxu0
    %v2371 = vadd.f32 %v2228, %v2370
    %v2372 = vpop.f32.mrb[0].mxu0
    %v2373 = vadd.f32 %v2230, %v2372
    %2374 = vmatprep.mubr.f32.mxu0 0.0
    %v2375 = vand.u32 %v128, 4294901760
    %v2376 = vsub.f32 %v128, %v2375
    %2377 = vmatmul.mubr.f32.gmra.mrb[0].mxu0 %v2376
    %v2378 = vpop.f32.mrb[0].mxu0
    %v2379 = vadd.f32 %v2235, %v2378
    %v2380 = vpop.f32.mrb[0].mxu0
    %v2381 = vadd.f32 %v2237, %v2380
    %2382 = vmatprep.mubr.f32.mxu0 0.0
    %v2383 = vand.u32 %v131, 4294901760
    %v2384 = vsub.f32 %v131, %v2383
    %2385 = vmatmul.mubr.f32.gmra.mrb[0].mxu0 %v2384
    %v2386 = vpop.f32.mrb[0].mxu0
    %v2387 = vadd.f32 %v2242, %v2386
    %v2388 = vpop.f32.mrb[0].mxu0
    %v2389 = vadd.f32 %v2244, %v2388
    %2390 = vdwg.mxu0
    %v2391 = vand.u32 %v31, 4294901760
    %2392 = vmatprep.subr.mxu0 %v2391
    %v2393 = vand.u32 %v30, 4294901760
    %2394 = vmatpush1.msra.mxu0 %v2393
    %v2395 = vand.u32 %v37, 4294901760
    %2396 = vmatprep.subr.mxu0 %v2395
    %v2397 = vand.u32 %v36, 4294901760
    %2398 = vmatpush1.msra.mxu0 %v2397
    %v2399 = vand.u32 %v43, 4294901760
    %2400 = vmatprep.subr.mxu0 %v2399
    %v2401 = vand.u32 %v42, 4294901760
    %2402 = vmatpush1.msra.mxu0 %v2401
    %v2403 = vand.u32 %v150, 4294901760
    %2404 = vmatprep.subr.mxu0 %v2403
    %v2405 = vand.u32 %v147, 4294901760
    %2406 = vmatpush1.msra.mxu0 %v2405
    %2407 = vmatprep.subr.mxu0 0.0
    %2408 = vmatpush1.msra.mxu0 0.0
    %2409 = vmatprep.subr.mxu0 0.0
    %2410 = vmatpush1.msra.mxu0 0.0
    %2411 = vmatprep.subr.mxu0 0.0
    %2412 = vmatpush1.msra.mxu0 0.0
    %2413 = vmatprep.subr.mxu0 0.0
    %2414 = vmatpush1.msra.mxu0 0.0
    %2415 = vmatprep.subr.mxu0 0.0
    %2416 = vmatpush1.msra.mxu0 0.0
    %2417 = vmatprep.subr.mxu0 0.0
    %2418 = vmatpush1.msra.mxu0 0.0
    %2419 = vmatprep.subr.mxu0 0.0
    %2420 = vmatpush1.msra.mxu0 0.0
    %2421 = vmatprep.subr.mxu0 0.0
    %2422 = vmatpush1.msra.mxu0 0.0
    %2423 = vmatprep.subr.mxu0 0.0
    %2424 = vmatpush1.msra.mxu0 0.0
    %2425 = vmatprep.subr.mxu0 0.0
    %2426 = vmatpush1.msra.mxu0 0.0
    %2427 = vmatprep.subr.mxu0 0.0
    %2428 = vmatpush1.msra.mxu0 0.0
    %2429 = vmatprep.subr.mxu0 0.0
    %2430 = vmatpush1.msra.mxu0 0.0
    %2431 = vmatprep.subr.mxu0 0.0
    %2432 = vmatpush1.msra.mxu0 0.0
    %2433 = vmatprep.subr.mxu0 0.0
    %2434 = vmatpush1.msra.mxu0 0.0
    %2435 = vmatprep.subr.mxu0 0.0
    %2436 = vmatpush1.msra.mxu0 0.0
    %2437 = vmatprep.subr.mxu0 0.0
    %2438 = vmatpush1.msra.mxu0 0.0
    %2439 = vmatprep.subr.mxu0 0.0
    %2440 = vmatpush1.msra.mxu0 0.0
    %2441 = vmatprep.subr.mxu0 0.0
    %2442 = vmatpush1.msra.mxu0 0.0
    %2443 = vmatprep.subr.mxu0 0.0
    %2444 = vmatpush1.msra.mxu0 0.0
    %2445 = vmatprep.subr.mxu0 0.0
    %2446 = vmatpush1.msra.mxu0 0.0
    %2447 = vmatprep.subr.mxu0 0.0
    %2448 = vmatpush1.msra.mxu0 0.0
    %2449 = vmatprep.subr.mxu0 0.0
    %2450 = vmatpush1.msra.mxu0 0.0
    %2451 = vmatprep.subr.mxu0 0.0
    %2452 = vmatpush1.msra.mxu0 0.0
    %2453 = vmatprep.subr.mxu0 0.0
    %2454 = vmatpush1.msra.mxu0 0.0
    %2455 = vmatprep.subr.mxu0 0.0
    %2456 = vmatpush1.msra.mxu0 0.0
    %2457 = vmatprep.subr.mxu0 0.0
    %2458 = vmatpush1.msra.mxu0 0.0
    %2459 = vmatprep.subr.mxu0 0.0
    %2460 = vmatpush1.msra.mxu0 0.0
    %2461 = vmatprep.subr.mxu0 0.0
    %2462 = vmatpush1.msra.mxu0 0.0
    %2463 = vmatprep.mubr.f32.mxu0 0.0
    %v2464 = vand.u32 %v110, 4294901760
    %v2465 = vsub.f32 %v110, %v2464
    %v2466 = vand.u32 %v2465, 4294901760
    %2467 = vmatmul.mubr.f32.gmra.mrb[0].mxu0 %v2466
    %v2468 = vpop.f32.mrb[0].mxu0
    %v2469 = vadd.f32 %v2331, %v2468
    %v2470 = vpop.f32.mrb[0].mxu0
    %v2471 = vadd.f32 %v2333, %v2470
    %2472 = vmatprep.mubr.f32.mxu0 0.0
    %v2473 = vand.u32 %v113, 4294901760
    %v2474 = vsub.f32 %v113, %v2473
    %v2475 = vand.u32 %v2474, 4294901760
    %2476 = vmatmul.mubr.f32.gmra.mrb[0].mxu0 %v2475
    %v2477 = vpop.f32.mrb[0].mxu0
    %v2478 = vadd.f32 %v2339, %v2477
    %v2479 = vpop.f32.mrb[0].mxu0
    %v2480 = vadd.f32 %v2341, %v2479
    %2481 = vmatprep.mubr.f32.mxu0 0.0
    %v2482 = vand.u32 %v116, 4294901760
    %v2483 = vsub.f32 %v116, %v2482
    %v2484 = vand.u32 %v2483, 4294901760
    %2485 = vmatmul.mubr.f32.gmra.mrb[0].mxu0 %v2484
    %v2486 = vpop.f32.mrb[0].mxu0
    %v2487 = vadd.f32 %v2347, %v2486
    %v2488 = vpop.f32.mrb[0].mxu0
    %v2489 = vadd.f32 %v2349, %v2488
    %2490 = vmatprep.mubr.f32.mxu0 0.0
    %v2491 = vand.u32 %v119, 4294901760
    %v2492 = vsub.f32 %v119, %v2491
    %v2493 = vand.u32 %v2492, 4294901760
    %2494 = vmatmul.mubr.f32.gmra.mrb[0].mxu0 %v2493
    %v2495 = vpop.f32.mrb[0].mxu0
    %v2496 = vadd.f32 %v2355, %v2495
    %v2497 = vpop.f32.mrb[0].mxu0
    %v2498 = vadd.f32 %v2357, %v2497
    %2499 = vmatprep.mubr.f32.mxu0 0.0
    %v2500 = vand.u32 %v122, 4294901760
    %v2501 = vsub.f32 %v122, %v2500
    %v2502 = vand.u32 %v2501, 4294901760
    %2503 = vmatmul.mubr.f32.gmra.mrb[0].mxu0 %v2502
    %v2504 = vpop.f32.mrb[0].mxu0
    %v2505 = vadd.f32 %v2363, %v2504
    %v2506 = vpop.f32.mrb[0].mxu0
    %v2507 = vadd.f32 %v2365, %v2506
    %2508 = vmatprep.mubr.f32.mxu0 0.0
    %v2509 = vand.u32 %v125, 4294901760
    %v2510 = vsub.f32 %v125, %v2509
    %v2511 = vand.u32 %v2510, 4294901760
    %2512 = vmatmul.mubr.f32.gmra.mrb[0].mxu0 %v2511
    %v2513 = vpop.f32.mrb[0].mxu0
    %v2514 = vadd.f32 %v2371, %v2513
    %v2515 = vpop.f32.mrb[0].mxu0
    %v2516 = vadd.f32 %v2373, %v2515
    %2517 = vmatprep.mubr.f32.mxu0 0.0
    %v2518 = vand.u32 %v128, 4294901760
    %v2519 = vsub.f32 %v128, %v2518
    %v2520 = vand.u32 %v2519, 4294901760
    %2521 = vmatmul.mubr.f32.gmra.mrb[0].mxu0 %v2520
    %v2522 = vpop.f32.mrb[0].mxu0
    %v2523 = vadd.f32 %v2379, %v2522
    %v2524 = vpop.f32.mrb[0].mxu0
    %v2525 = vadd.f32 %v2381, %v2524
    %2526 = vmatprep.mubr.f32.mxu0 0.0
    %v2527 = vand.u32 %v131, 4294901760
    %v2528 = vsub.f32 %v131, %v2527
    %v2529 = vand.u32 %v2528, 4294901760
    %2530 = vmatmul.mubr.f32.gmra.mrb[0].mxu0 %v2529
    %v2531 = vpop.f32.mrb[0].mxu0
    %v2532 = vadd.f32 %v2387, %v2531
    %v2533 = vpop.f32.mrb[0].mxu0
    %v2534 = vadd.f32 %v2389, %v2533
    %2535 = vdwg.mxu0
    %v2536 = vand.u32 %v31, 4294901760
    %v2537 = vsub.f32 %v31, %v2536
    %v2538 = vand.u32 %v2537, 4294901760
    %2539 = vmatprep.subr.mxu0 %v2538
    %v2540 = vand.u32 %v30, 4294901760
    %v2541 = vsub.f32 %v30, %v2540
    %v2542 = vand.u32 %v2541, 4294901760
    %2543 = vmatpush1.msra.mxu0 %v2542
    %v2544 = vand.u32 %v37, 4294901760
    %v2545 = vsub.f32 %v37, %v2544
    %v2546 = vand.u32 %v2545, 4294901760
    %2547 = vmatprep.subr.mxu0 %v2546
    %v2548 = vand.u32 %v36, 4294901760
    %v2549 = vsub.f32 %v36, %v2548
    %v2550 = vand.u32 %v2549, 4294901760
    %2551 = vmatpush1.msra.mxu0 %v2550
    %v2552 = vand.u32 %v43, 4294901760
    %v2553 = vsub.f32 %v43, %v2552
    %v2554 = vand.u32 %v2553, 4294901760
    %2555 = vmatprep.subr.mxu0 %v2554
    %v2556 = vand.u32 %v42, 4294901760
    %v2557 = vsub.f32 %v42, %v2556
    %v2558 = vand.u32 %v2557, 4294901760
    %2559 = vmatpush1.msra.mxu0 %v2558
    %v2560 = vand.u32 %v150, 4294901760
    %v2561 = vsub.f32 %v150, %v2560
    %v2562 = vand.u32 %v2561, 4294901760
    %2563 = vmatprep.subr.mxu0 %v2562
    %v2564 = vand.u32 %v147, 4294901760
    %v2565 = vsub.f32 %v147, %v2564
    %v2566 = vand.u32 %v2565, 4294901760
    %2567 = vmatpush1.msra.mxu0 %v2566
    %2568 = vmatprep.subr.mxu0 0.0
    %2569 = vmatpush1.msra.mxu0 0.0
    %2570 = vmatprep.subr.mxu0 0.0
    %2571 = vmatpush1.msra.mxu0 0.0
    %2572 = vmatprep.subr.mxu0 0.0
    %2573 = vmatpush1.msra.mxu0 0.0
    %2574 = vmatprep.subr.mxu0 0.0
    %2575 = vmatpush1.msra.mxu0 0.0
    %2576 = vmatprep.subr.mxu0 0.0
    %2577 = vmatpush1.msra.mxu0 0.0
    %2578 = vmatprep.subr.mxu0 0.0
    %2579 = vmatpush1.msra.mxu0 0.0
    %2580 = vmatprep.subr.mxu0 0.0
    %2581 = vmatpush1.msra.mxu0 0.0
    %2582 = vmatprep.subr.mxu0 0.0
    %2583 = vmatpush1.msra.mxu0 0.0
    %2584 = vmatprep.subr.mxu0 0.0
    %2585 = vmatpush1.msra.mxu0 0.0
    %2586 = vmatprep.subr.mxu0 0.0
    %2587 = vmatpush1.msra.mxu0 0.0
    %2588 = vmatprep.subr.mxu0 0.0
    %2589 = vmatpush1.msra.mxu0 0.0
    %2590 = vmatprep.subr.mxu0 0.0
    %2591 = vmatpush1.msra.mxu0 0.0
    %2592 = vmatprep.subr.mxu0 0.0
    %2593 = vmatpush1.msra.mxu0 0.0
    %2594 = vmatprep.subr.mxu0 0.0
    %2595 = vmatpush1.msra.mxu0 0.0
    %2596 = vmatprep.subr.mxu0 0.0
    %2597 = vmatpush1.msra.mxu0 0.0
    %2598 = vmatprep.subr.mxu0 0.0
    %2599 = vmatpush1.msra.mxu0 0.0
    %2600 = vmatprep.subr.mxu0 0.0
    %2601 = vmatpush1.msra.mxu0 0.0
    %2602 = vmatprep.subr.mxu0 0.0
    %2603 = vmatpush1.msra.mxu0 0.0
    %2604 = vmatprep.subr.mxu0 0.0
    %2605 = vmatpush1.msra.mxu0 0.0
    %2606 = vmatprep.subr.mxu0 0.0
    %2607 = vmatpush1.msra.mxu0 0.0
    %2608 = vmatprep.subr.mxu0 0.0
    %2609 = vmatpush1.msra.mxu0 0.0
    %2610 = vmatprep.subr.mxu0 0.0
    %2611 = vmatpush1.msra.mxu0 0.0
    %2612 = vmatprep.subr.mxu0 0.0
    %2613 = vmatpush1.msra.mxu0 0.0
    %2614 = vmatprep.subr.mxu0 0.0
    %2615 = vmatpush1.msra.mxu0 0.0
    %2616 = vmatprep.subr.mxu0 0.0
    %2617 = vmatpush1.msra.mxu0 0.0
    %2618 = vmatprep.subr.mxu0 0.0
    %2619 = vmatpush1.msra.mxu0 0.0
    %2620 = vmatprep.subr.mxu0 0.0
    %2621 = vmatpush1.msra.mxu0 0.0
    %2622 = vmatprep.subr.mxu0 0.0
    %2623 = vmatpush1.msra.mxu0 0.0
    %2624 = vmatprep.mubr.f32.mxu0 0.0
    %v2625 = vand.u32 %v110, 4294901760
    %2626 = vmatmul.mubr.f32.gmra.mrb[0].mxu0 %v2625
    %v2627 = vpop.f32.mrb[0].mxu0
    %v2628 = vadd.f32 %v2469, %v2627
    %v2629 = vpop.f32.mrb[0].mxu0
    %v2630 = vadd.f32 %v2471, %v2629
    %2631 = vmatprep.mubr.f32.mxu0 0.0
    %v2632 = vand.u32 %v113, 4294901760
    %2633 = vmatmul.mubr.f32.gmra.mrb[0].mxu0 %v2632
    %v2634 = vpop.f32.mrb[0].mxu0
    %v2635 = vadd.f32 %v2478, %v2634
    %v2636 = vpop.f32.mrb[0].mxu0
    %v2637 = vadd.f32 %v2480, %v2636
    %2638 = vmatprep.mubr.f32.mxu0 0.0
    %v2639 = vand.u32 %v116, 4294901760
    %2640 = vmatmul.mubr.f32.gmra.mrb[0].mxu0 %v2639
    %v2641 = vpop.f32.mrb[0].mxu0
    %v2642 = vadd.f32 %v2487, %v2641
    %v2643 = vpop.f32.mrb[0].mxu0
    %v2644 = vadd.f32 %v2489, %v2643
    %2645 = vmatprep.mubr.f32.mxu0 0.0
    %v2646 = vand.u32 %v119, 4294901760
    %2647 = vmatmul.mubr.f32.gmra.mrb[0].mxu0 %v2646
    %v2648 = vpop.f32.mrb[0].mxu0
    %v2649 = vadd.f32 %v2496, %v2648
    %v2650 = vpop.f32.mrb[0].mxu0
    %v2651 = vadd.f32 %v2498, %v2650
    %2652 = vmatprep.mubr.f32.mxu0 0.0
    %v2653 = vand.u32 %v122, 4294901760
    %2654 = vmatmul.mubr.f32.gmra.mrb[0].mxu0 %v2653
    %v2655 = vpop.f32.mrb[0].mxu0
    %v2656 = vadd.f32 %v2505, %v2655
    %v2657 = vpop.f32.mrb[0].mxu0
    %v2658 = vadd.f32 %v2507, %v2657
    %2659 = vmatprep.mubr.f32.mxu0 0.0
    %v2660 = vand.u32 %v125, 4294901760
    %2661 = vmatmul.mubr.f32.gmra.mrb[0].mxu0 %v2660
    %v2662 = vpop.f32.mrb[0].mxu0
    %v2663 = vadd.f32 %v2514, %v2662
    %v2664 = vpop.f32.mrb[0].mxu0
    %v2665 = vadd.f32 %v2516, %v2664
    %2666 = vmatprep.mubr.f32.mxu0 0.0
    %v2667 = vand.u32 %v128, 4294901760
    %2668 = vmatmul.mubr.f32.gmra.mrb[0].mxu0 %v2667
    %v2669 = vpop.f32.mrb[0].mxu0
    %v2670 = vadd.f32 %v2523, %v2669
    %v2671 = vpop.f32.mrb[0].mxu0
    %v2672 = vadd.f32 %v2525, %v2671
    %2673 = vmatprep.mubr.f32.mxu0 0.0
    %v2674 = vand.u32 %v131, 4294901760
    %2675 = vmatmul.mubr.f32.gmra.mrb[0].mxu0 %v2674
    %v2676 = vpop.f32.mrb[0].mxu0
    %v2677 = vadd.f32 %v2532, %v2676
    %v2678 = vpop.f32.mrb[0].mxu0
    %v2679 = vadd.f32 %v2534, %v2678
    %2680 = vdwg.mxu0
    %v2681 = vand.u32 %v31, 4294901760
    %2682 = vmatprep.subr.mxu0 %v2681
    %v2683 = vand.u32 %v30, 4294901760
    %2684 = vmatpush1.msra.mxu0 %v2683
    %v2685 = vand.u32 %v37, 4294901760
    %2686 = vmatprep.subr.mxu0 %v2685
    %v2687 = vand.u32 %v36, 4294901760
    %2688 = vmatpush1.msra.mxu0 %v2687
    %v2689 = vand.u32 %v43, 4294901760
    %2690 = vmatprep.subr.mxu0 %v2689
    %v2691 = vand.u32 %v42, 4294901760
    %2692 = vmatpush1.msra.mxu0 %v2691
    %v2693 = vand.u32 %v150, 4294901760
    %2694 = vmatprep.subr.mxu0 %v2693
    %v2695 = vand.u32 %v147, 4294901760
    %2696 = vmatpush1.msra.mxu0 %v2695
    %2697 = vmatprep.subr.mxu0 0.0
    %2698 = vmatpush1.msra.mxu0 0.0
    %2699 = vmatprep.subr.mxu0 0.0
    %2700 = vmatpush1.msra.mxu0 0.0
    %2701 = vmatprep.subr.mxu0 0.0
    %2702 = vmatpush1.msra.mxu0 0.0
    %2703 = vmatprep.subr.mxu0 0.0
    %2704 = vmatpush1.msra.mxu0 0.0
    %2705 = vmatprep.subr.mxu0 0.0
    %2706 = vmatpush1.msra.mxu0 0.0
    %2707 = vmatprep.subr.mxu0 0.0
    %2708 = vmatpush1.msra.mxu0 0.0
    %2709 = vmatprep.subr.mxu0 0.0
    %2710 = vmatpush1.msra.mxu0 0.0
    %2711 = vmatprep.subr.mxu0 0.0
    %2712 = vmatpush1.msra.mxu0 0.0
    %2713 = vmatprep.subr.mxu0 0.0
    %2714 = vmatpush1.msra.mxu0 0.0
    %2715 = vmatprep.subr.mxu0 0.0
    %2716 = vmatpush1.msra.mxu0 0.0
    %2717 = vmatprep.subr.mxu0 0.0
    %2718 = vmatpush1.msra.mxu0 0.0
    %2719 = vmatprep.subr.mxu0 0.0
    %2720 = vmatpush1.msra.mxu0 0.0
    %2721 = vmatprep.subr.mxu0 0.0
    %2722 = vmatpush1.msra.mxu0 0.0
    %2723 = vmatprep.subr.mxu0 0.0
    %2724 = vmatpush1.msra.mxu0 0.0
    %2725 = vmatprep.subr.mxu0 0.0
    %2726 = vmatpush1.msra.mxu0 0.0
    %2727 = vmatprep.subr.mxu0 0.0
    %2728 = vmatpush1.msra.mxu0 0.0
    %2729 = vmatprep.subr.mxu0 0.0
    %2730 = vmatpush1.msra.mxu0 0.0
    %2731 = vmatprep.subr.mxu0 0.0
    %2732 = vmatpush1.msra.mxu0 0.0
    %2733 = vmatprep.subr.mxu0 0.0
    %2734 = vmatpush1.msra.mxu0 0.0
    %2735 = vmatprep.subr.mxu0 0.0
    %2736 = vmatpush1.msra.mxu0 0.0
    %2737 = vmatprep.subr.mxu0 0.0
    %2738 = vmatpush1.msra.mxu0 0.0
    %2739 = vmatprep.subr.mxu0 0.0
    %2740 = vmatpush1.msra.mxu0 0.0
    %2741 = vmatprep.subr.mxu0 0.0
    %2742 = vmatpush1.msra.mxu0 0.0
    %2743 = vmatprep.subr.mxu0 0.0
    %2744 = vmatpush1.msra.mxu0 0.0
    %2745 = vmatprep.subr.mxu0 0.0
    %2746 = vmatpush1.msra.mxu0 0.0
    %2747 = vmatprep.subr.mxu0 0.0
    %2748 = vmatpush1.msra.mxu0 0.0
    %2749 = vmatprep.subr.mxu0 0.0
    %2750 = vmatpush1.msra.mxu0 0.0
    %2751 = vmatprep.subr.mxu0 0.0
    %2752 = vmatpush1.msra.mxu0 0.0
    %2753 = vmatprep.mubr.f32.mxu0 0.0
    %v2754 = vand.u32 %v110, 4294901760
    %2755 = vmatmul.mubr.f32.gmra.mrb[0].mxu0 %v2754
    %v2756 = vpop.f32.mrb[0].mxu0
    %v2757 = vadd.f32 %v2628, %v2756
    %v2758 = vpop.f32.mrb[0].mxu0
    %v2759 = vadd.f32 %v2630, %v2758
    %2760 = vmatprep.mubr.f32.mxu0 0.0
    %v2761 = vand.u32 %v113, 4294901760
    %2762 = vmatmul.mubr.f32.gmra.mrb[0].mxu0 %v2761
    %v2763 = vpop.f32.mrb[0].mxu0
    %v2764 = vadd.f32 %v2635, %v2763
    %v2765 = vpop.f32.mrb[0].mxu0
    %v2766 = vadd.f32 %v2637, %v2765
    %2767 = vmatprep.mubr.f32.mxu0 0.0
    %v2768 = vand.u32 %v116, 4294901760
    %2769 = vmatmul.mubr.f32.gmra.mrb[0].mxu0 %v2768
    %v2770 = vpop.f32.mrb[0].mxu0
    %v2771 = vadd.f32 %v2642, %v2770
    %v2772 = vpop.f32.mrb[0].mxu0
    %v2773 = vadd.f32 %v2644, %v2772
    %2774 = vmatprep.mubr.f32.mxu0 0.0
    %v2775 = vand.u32 %v119, 4294901760
    %2776 = vmatmul.mubr.f32.gmra.mrb[0].mxu0 %v2775
    %v2777 = vpop.f32.mrb[0].mxu0
    %v2778 = vadd.f32 %v2649, %v2777
    %v2779 = vpop.f32.mrb[0].mxu0
    %v2780 = vadd.f32 %v2651, %v2779
    %2781 = vmatprep.mubr.f32.mxu0 0.0
    %v2782 = vand.u32 %v122, 4294901760
    %2783 = vmatmul.mubr.f32.gmra.mrb[0].mxu0 %v2782
    %v2784 = vpop.f32.mrb[0].mxu0
    %v2785 = vadd.f32 %v2656, %v2784
    %v2786 = vpop.f32.mrb[0].mxu0
    %v2787 = vadd.f32 %v2658, %v2786
    %2788 = vmatprep.mubr.f32.mxu0 0.0
    %v2789 = vand.u32 %v125, 4294901760
    %2790 = vmatmul.mubr.f32.gmra.mrb[0].mxu0 %v2789
    %v2791 = vpop.f32.mrb[0].mxu0
    %v2792 = vadd.f32 %v2663, %v2791
    %v2793 = vpop.f32.mrb[0].mxu0
    %v2794 = vadd.f32 %v2665, %v2793
    %2795 = vmatprep.mubr.f32.mxu0 0.0
    %v2796 = vand.u32 %v128, 4294901760
    %2797 = vmatmul.mubr.f32.gmra.mrb[0].mxu0 %v2796
    %v2798 = vpop.f32.mrb[0].mxu0
    %v2799 = vadd.f32 %v2670, %v2798
    %v2800 = vpop.f32.mrb[0].mxu0
    %v2801 = vadd.f32 %v2672, %v2800
    %2802 = vmatprep.mubr.f32.mxu0 0.0
    %v2803 = vand.u32 %v131, 4294901760
    %2804 = vmatmul.mubr.f32.gmra.mrb[0].mxu0 %v2803
    %v2805 = vpop.f32.mrb[0].mxu0
    %v2806 = vadd.f32 %v2677, %v2805
    %v2807 = vpop.f32.mrb[0].mxu0
    %v2808 = vadd.f32 %v2679, %v2807
    %2809 = vdwg.mxu0
    %2810 = vst [vmem:[#allocation5] sm:$0xff] %v985
    %2811 = vst [vmem:[#allocation5 + $0x8] sm:$0xff] %v987
    %2812 = vst [vmem:[#allocation5 + $0x10] sm:$0xff] %v1871
    %2813 = vst [vmem:[#allocation5 + $0x18] sm:$0xff] %v1873
    %2814 = vst [vmem:[#allocation5 + $0x20] sm:$0xff] %v2757
    %vm2815 = vcmask 728064
    %2816 = vst.msk [vmem:[#allocation5 + $0x28] sm:$0xff] %vm2815, %v2759
    %2817 = vst [vmem:[#allocation5 + $0x30] sm:$0xff] %v992
    %2818 = vst [vmem:[#allocation5 + $0x38] sm:$0xff] %v994
    %2819 = vst [vmem:[#allocation5 + $0x40] sm:$0xff] %v1878
    %2820 = vst [vmem:[#allocation5 + $0x48] sm:$0xff] %v1880
    %2821 = vst [vmem:[#allocation5 + $0x50] sm:$0xff] %v2764
    %2822 = vst.msk [vmem:[#allocation5 + $0x58] sm:$0xff] %vm2815, %v2766
    %2823 = vst [vmem:[#allocation5 + $0x60] sm:$0xff] %v999
    %2824 = vst [vmem:[#allocation5 + $0x68] sm:$0xff] %v1001
    %2825 = vst [vmem:[#allocation5 + $0x70] sm:$0xff] %v1885
    %2826 = vst [vmem:[#allocation5 + $0x78] sm:$0xff] %v1887
    %2827 = vst [vmem:[#allocation5 + $0x80] sm:$0xff] %v2771
    %2828 = vst.msk [vmem:[#allocation5 + $0x88] sm:$0xff] %vm2815, %v2773
    %2829 = vst [vmem:[#allocation5 + $0x90] sm:$0xff] %v1006
    %2830 = vst [vmem:[#allocation5 + $0x98] sm:$0xff] %v1008
    %2831 = vst [vmem:[#allocation5 + $0xa0] sm:$0xff] %v1892
    %2832 = vst [vmem:[#allocation5 + $0xa8] sm:$0xff] %v1894
    %2833 = vst [vmem:[#allocation5 + $0xb0] sm:$0xff] %v2778
    %2834 = vst.msk [vmem:[#allocation5 + $0xb8] sm:$0xff] %vm2815, %v2780
    %2835 = vst [vmem:[#allocation5 + $0xc0] sm:$0xff] %v1013
    %2836 = vst [vmem:[#allocation5 + $0xc8] sm:$0xff] %v1015
    %2837 = vst [vmem:[#allocation5 + $0xd0] sm:$0xff] %v1899
    %2838 = vst [vmem:[#allocation5 + $0xd8] sm:$0xff] %v1901
    %2839 = vst [vmem:[#allocation5 + $0xe0] sm:$0xff] %v2785
    %2840 = vst.msk [vmem:[#allocation5 + $0xe8] sm:$0xff] %vm2815, %v2787
    %2841 = vst [vmem:[#allocation5 + $0xf0] sm:$0xff] %v1020
    %2842 = vst [vmem:[#allocation5 + $0xf8] sm:$0xff] %v1022
    %2843 = vst [vmem:[#allocation5 + $0x100] sm:$0xff] %v1906
    %2844 = vst [vmem:[#allocation5 + $0x108] sm:$0xff] %v1908
    %2845 = vst [vmem:[#allocation5 + $0x110] sm:$0xff] %v2792
    %2846 = vst.msk [vmem:[#allocation5 + $0x118] sm:$0xff] %vm2815, %v2794
    %2847 = vst [vmem:[#allocation5 + $0x120] sm:$0xff] %v1027
    %2848 = vst [vmem:[#allocation5 + $0x128] sm:$0xff] %v1029
    %2849 = vst [vmem:[#allocation5 + $0x130] sm:$0xff] %v1913
    %2850 = vst [vmem:[#allocation5 + $0x138] sm:$0xff] %v1915
    %2851 = vst [vmem:[#allocation5 + $0x140] sm:$0xff] %v2799
    %2852 = vst.msk [vmem:[#allocation5 + $0x148] sm:$0xff] %vm2815, %v2801
    %2853 = vst [vmem:[#allocation5 + $0x150] sm:$0xff] %v1034
    %2854 = vst [vmem:[#allocation5 + $0x158] sm:$0xff] %v1036
    %2855 = vst [vmem:[#allocation5 + $0x160] sm:$0xff] %v1920
    %2856 = vst [vmem:[#allocation5 + $0x168] sm:$0xff] %v1922
    %2857 = vst [vmem:[#allocation5 + $0x170] sm:$0xff] %v2806
    %2858 = vst.msk [vmem:[#allocation5 + $0x178] sm:$0xff] %vm2815, %v2808
    // Predicated region
    $region14: #{tpu_custom_call.1} parent=1 // pred_check
      _
    $region15: #{tpu_custom_call.1} parent=1 // pred_check_branch
      %2860 = sbr.rel (0) target = $region17
    $region16: #{tpu_custom_call.1} parent=1 // pred_region
      %s2862 = ssub.s32 6144, 6144
      %2863 = vsyncadd [#allocation4], %s2862
      %s2864 = sshll.u32 [#allocation5], 4
      %s2865 = int_to_ptr.vmem [resolvable:$true] %s2864
      %2870 = dma.vmem_to_hbm [thread:$0]  %s2865, 6144, %s2, [#allocation4], 768, 768, 48
    $region17: #{tpu_custom_call.1} parent=1 // pred_fallthru
      _
    // Predicated region
    $region18: #{tpu_custom_call.1} parent=1 // pred_check
      _
    $region19: #{tpu_custom_call.1} parent=1 // pred_check_branch
      %2872 = sbr.rel (0) target = $region21
    $region20: #{tpu_custom_call.1} parent=1 // pred_region
      %2873 = dma.done [#allocation4], 6144
    $region21: #{tpu_custom_call.1} parent=1 // pred_fallthru
      _
    %2874 = vsyncpa [#allocation3], 1
    %2875 = vsyncpa [#allocation4], 1

</llo_original>
